<compile_context>
chip_gen: v7x
topology: tpu7x:2x2x1
jax: 0.10.0
libtpu: 0.0.40
codegen_flags: <defaults>
</compile_context>

<pallas_src>
import math
from typing import NamedTuple, Tuple

import numpy as np
import jax
import jax.numpy as jnp
from jax import lax
from jax.experimental import pallas as pl
from jax.experimental.pallas import tpu as pltpu

BN_EPS = 1e-3          # ultralytics initialize_weights sets BatchNorm2d eps=1e-3
LANE = 128

try:  # derive VMEM budgets from the actual chip (v7x has 64 MiB / core)
    _VMEM_CAP = int(pltpu.get_tpu_info().vmem_capacity_bytes)
except Exception:  # pragma: no cover - conservative default
    _VMEM_CAP = 128 * 1024 * 1024

VMEM_MM = min(64 * 1024 * 1024, max(32 * 1024 * 1024, _VMEM_CAP // 3))
FUSED3_BUDGET = min(56 * 1024 * 1024, int(_VMEM_CAP * 0.45))

MODEL_VARIANTS = {
    'n': {'depth_multiple': 0.33, 'width_multiple': 0.25, 'max_channels': 1024},
    's': {'depth_multiple': 0.33, 'width_multiple': 0.5, 'max_channels': 1024},
    'm': {'depth_multiple': 0.67, 'width_multiple': 0.75, 'max_channels': 768},
    'l': {'depth_multiple': 1.0, 'width_multiple': 1.0, 'max_channels': 512},
    'x': {'depth_multiple': 1.33, 'width_multiple': 1.25, 'max_channels': 512},
}


# ------------------------------------------------------------------ helpers

def _ru(x, m):
    return ((x + m - 1) // m) * m


def _pad2(a, Rp, Cp):
    R, C = a.shape
    if Rp == R and Cp == C:
        return a
    return jnp.pad(a, ((0, Rp - R), (0, Cp - C)))


def _pick_tn(N):
    return 256 if (N >= 256 and N % 256 == 0) else LANE


# An activation carried between layers: actual activation = f(y*scale + shift)
# with f = SiLU when silu=True, identity otherwise (affine skipped when affine=False).
# Channels are stored as padded segments; padded lanes have scale=shift=0 and zero
# weight rows in every consumer, so they stay exactly 0.
class Act(NamedTuple):
    y: jax.Array
    scale: jax.Array
    shift: jax.Array
    silu: bool
    affine: bool
    segs: Tuple[Tuple[int, int], ...]   # ((logical_c, padded_c), ...)


def _seg_total(segs):
    return sum(cp for _, cp in segs)


def _seg_indices(segs):
    idx, off = [], 0
    for c, cp in segs:
        idx.extend(range(off, off + c))
        off += cp
    return idx


def _pad_vec(v, segs):
    out = jnp.zeros((_seg_total(segs),), jnp.float32)
    idx = np.asarray(_seg_indices(segs), dtype=np.int32)
    return out.at[idx].set(v.astype(jnp.float32))


def _build_wmat(w, in_segs, out_segs):
    # w: (CoutL, CinL, k, k) torch layout -> (k*k, Cp_in, Cp_out) with zero pad rows/cols
    CoutL, CinL, k, _ = w.shape
    Cpin, Cpout = _seg_total(in_segs), _seg_total(out_segs)
    in_idx = np.asarray(_seg_indices(in_segs), dtype=np.int32)
    out_idx = np.asarray(_seg_indices(out_segs), dtype=np.int32)
    assert len(in_idx) == CinL and len(out_idx) == CoutL
    wt = jnp.transpose(w, (2, 3, 1, 0)).reshape(k * k, CinL, CoutL)
    wfull = jnp.zeros((k * k, Cpin, Cpout), jnp.float32)
    return wfull.at[:, in_idx[:, None], out_idx[None, :]].set(wt)


def _bn_scale_shift(ssum, ssq, count, gamma_p, beta_p):
    # training-mode BN statistics (exact f32 sums over the real output positions)
    mean = ssum / float(count)
    var = jnp.maximum(ssq / float(count) - mean * mean, 0.0)
    rstd = lax.rsqrt(var + BN_EPS)
    scale = gamma_p * rstd
    shift = beta_p - mean * scale
    return scale, shift


# ------------------------------------------------------------------ Pallas: tiled fused matmul

def _mm_fused_stats(a2, w2, sc, sh, apply_affine, apply_silu):
    """(M,K)x(K,N) matmul with the producer's BN+SiLU fused onto A; returns raw
    bf16 output plus exact f32 per-channel sum / sum-of-squares (padded rows masked)."""
    M, K = a2.shape
    N = w2.shape[1]
    TM = 512 if M > 512 else _ru(M, 8)
    Mp = _ru(M, TM)
    Kp = _ru(K, LANE)
    if Kp > 1024:
        TK = 512
        Kp = _ru(Kp, TK)
    else:
        TK = Kp
    TN = _pick_tn(N)
    Np = _ru(N, TN)
    nI, nJ, nK = Mp // TM, Np // TN, Kp // TK

    a = _pad2(a2.astype(jnp.bfloat16), Mp, Kp)
    w = _pad2(w2.astype(jnp.bfloat16), Kp, Np)
    scp = jnp.pad(sc.astype(jnp.float32), (0, Kp - K)).reshape(1, Kp)
    shp = jnp.pad(sh.astype(jnp.float32), (0, Kp - K)).reshape(1, Kp)

    def kern(a_ref, w_ref, sc_ref, sh_ref, y_ref, sum_ref, ssq_ref, acc_ref):
        i = pl.program_id(0)
        k = pl.program_id(2)

        @pl.when(k == 0)
        def _():
            acc_ref[...] = jnp.zeros_like(acc_ref)

        av = a_ref[...]
        if apply_affine:
            z = av.astype(jnp.float32) * sc_ref[...] + sh_ref[...]
            if apply_silu:
                z = z * pl.reciprocal(1.0 + jnp.exp(-z), approx=True)
            av = z.astype(jnp.bfloat16)
        acc_ref[...] += jnp.dot(av, w_ref[...], preferred_element_type=jnp.float32)

        @pl.when(k == nK - 1)
        def _():
            y = acc_ref[...]
            y_ref[...] = y.astype(y_ref.dtype)
            rows = lax.broadcasted_iota(jnp.int32, (TM, 1), 0) + i * TM
            ym = jnp.where(rows < M, y, 0.0)
            s = jnp.sum(ym, axis=0, keepdims=True)
            q = jnp.sum(ym * ym, axis=0, keepdims=True)
            sum_ref[...] = jnp.broadcast_to(s, (1, 8, TN))
            ssq_ref[...] = jnp.broadcast_to(q, (1, 8, TN))

    y, ssum, ssq = pl.pallas_call(
        kern,
        out_shape=(jax.ShapeDtypeStruct((Mp, Np), jnp.bfloat16),
                   jax.ShapeDtypeStruct((nI, 8, Np), jnp.float32),
                   jax.ShapeDtypeStruct((nI, 8, Np), jnp.float32)),
        grid_spec=pltpu.PrefetchScalarGridSpec(
            num_scalar_prefetch=0,
            grid=(nI, nJ, nK),
            in_specs=[pl.BlockSpec((TM, TK), lambda i, j, k: (i, k)),
                      pl.BlockSpec((TK, TN), lambda i, j, k: (k, j)),
                      pl.BlockSpec((1, TK), lambda i, j, k: (0, k)),
                      pl.BlockSpec((1, TK), lambda i, j, k: (0, k))],
            out_specs=(pl.BlockSpec((TM, TN), lambda i, j, k: (i, j)),
                       pl.BlockSpec((1, 8, TN), lambda i, j, k: (i, 0, j)),
                       pl.BlockSpec((1, 8, TN), lambda i, j, k: (i, 0, j))),
            scratch_shapes=[pltpu.VMEM((TM, TN), jnp.float32)]),
        compiler_params=pltpu.CompilerParams(
            dimension_semantics=("parallel", "parallel", "arbitrary"),
            vmem_limit_bytes=VMEM_MM),
    )(a, w, scp, shp)

    ssum = jnp.sum(ssum, axis=(0, 1)) / 8.0   # 8x replicated per-tile partials
    ssq = jnp.sum(ssq, axis=(0, 1)) / 8.0
    return y, ssum, ssq, Np


def _mm_bias_fused(a2, w2, bias, sc, sh, apply_affine, apply_silu):
    """Plain matmul + bias (Detect final 1x1 convs) with input BN+SiLU fused; f32 out."""
    M, K = a2.shape
    N = w2.shape[1]
    TM = 512 if M > 512 else _ru(M, 8)
    Mp = _ru(M, TM)
    Kp = _ru(K, LANE)
    if Kp > 1024:
        TK = 512
        Kp = _ru(Kp, TK)
    else:
        TK = Kp
    TN = _pick_tn(N)
    Np = _ru(N, TN)
    nI, nJ, nK = Mp // TM, Np // TN, Kp // TK

    a = _pad2(a2.astype(jnp.bfloat16), Mp, Kp)
    w = _pad2(w2.astype(jnp.bfloat16), Kp, Np)
    scp = jnp.pad(sc.astype(jnp.float32), (0, Kp - K)).reshape(1, Kp)
    shp = jnp.pad(sh.astype(jnp.float32), (0, Kp - K)).reshape(1, Kp)
    bp = jnp.pad(bias.astype(jnp.float32), (0, Np - N)).reshape(1, Np)

    def kern(a_ref, w_ref, sc_ref, sh_ref, b_ref, o_ref, acc_ref):
        k = pl.program_id(2)

        @pl.when(k == 0)
        def _():
            acc_ref[...] = jnp.zeros_like(acc_ref)

        av = a_ref[...]
        if apply_affine:
            z = av.astype(jnp.float32) * sc_ref[...] + sh_ref[...]
            if apply_silu:
                z = z * pl.reciprocal(1.0 + jnp.exp(-z), approx=True)
            av = z.astype(jnp.bfloat16)
        acc_ref[...] += jnp.dot(av, w_ref[...], preferred_element_type=jnp.float32)

        @pl.when(k == nK - 1)
        def _():
            o_ref[...] = (acc_ref[...] + b_ref[...]).astype(o_ref.dtype)

    out = pl.pallas_call(
        kern,
        out_shape=jax.ShapeDtypeStruct((Mp, Np), jnp.float32),
        grid_spec=pltpu.PrefetchScalarGridSpec(
            num_scalar_prefetch=0,
            grid=(nI, nJ, nK),
            in_specs=[pl.BlockSpec((TM, TK), lambda i, j, k: (i, k)),
                      pl.BlockSpec((TK, TN), lambda i, j, k: (k, j)),
                      pl.BlockSpec((1, TK), lambda i, j, k: (0, k)),
                      pl.BlockSpec((1, TK), lambda i, j, k: (0, k)),
                      pl.BlockSpec((1, TN), lambda i, j, k: (0, j))],
            out_specs=pl.BlockSpec((TM, TN), lambda i, j, k: (i, j)),
            scratch_shapes=[pltpu.VMEM((TM, TN), jnp.float32)]),
        compiler_params=pltpu.CompilerParams(
            dimension_semantics=("parallel", "parallel", "arbitrary"),
            vmem_limit_bytes=VMEM_MM),
    )(a, w, scp, shp, bp)
    return out


# ------------------------------------------------------------------ Pallas: fused 3x3 stride-1 conv

def _conv3_vmem_est(H, W, Cpin, CoutP, TN):
    Wp2 = W + 2
    MA = (H + 2) * Wp2 + Wp2
    MO = H * Wp2
    return (2 * MA * Cpin * 2        # double-buffered input block (bf16)
            + MA * Cpin * 6          # f32 + bf16 activated copies (compiler temps)
            + MO * Cpin * 2          # shifted-tap temp (bf16)
            + MO * TN * 4            # f32 accumulator
            + 2 * MO * TN * 2        # double-buffered output block (bf16)
            + 2 * 9 * Cpin * TN * 2)  # double-buffered weights


def _conv3x3_s1_fused(act, wfull, CoutP):
    """3x3 stride-1 conv with im2col done in-kernel (9 shifted matmuls over the
    flattened, zero-padded image) + fused input BN/SiLU + exact BN stats."""
    Nb, H, W, Cpin = act.y.shape
    Wp2 = W + 2
    MA = (H + 2) * Wp2 + Wp2           # flat padded image + one extra row for tap overreach
    MO = H * Wp2                       # extended output (2 garbage columns/row, masked)
    TN = _pick_tn(CoutP)
    nJ = CoutP // TN
    apply_affine, apply_silu = act.affine, act.silu

    ypad = jnp.pad(act.y, ((0, 0), (1, 1), (1, 1), (0, 0)))
    aflat = ypad.reshape(Nb, (H + 2) * Wp2, Cpin)
    aflat = jnp.pad(aflat, ((0, 0), (0, Wp2), (0, 0)))

    wb = wfull.astype(jnp.bfloat16)                       # (9, Cpin, CoutP)
    scp = act.scale.astype(jnp.float32).reshape(1, Cpin)
    shp = act.shift.astype(jnp.float32).reshape(1, Cpin)

    def kern(a_ref, w_ref, sc_ref, sh_ref, y_ref, sum_ref, ssq_ref):
        av = a_ref[0]
        if apply_affine:
            z = av.astype(jnp.float32) * sc_ref[...] + sh_ref[...]
            if apply_silu:
                z = z * pl.reciprocal(1.0 + jnp.exp(-z), approx=True)
        else:
            z = av.astype(jnp.float32)
        # zero the spatial halo (conv pads with zero *activation*)
        qa = lax.broadcasted_iota(jnp.int32, (MA, 1), 0)
        ra = qa // Wp2
        ca = qa - ra * Wp2
        interior = jnp.logical_and(jnp.logical_and(ra >= 1, ra <= H),
                                   jnp.logical_and(ca >= 1, ca <= W))
        xact = jnp.where(interior, z, 0.0).astype(jnp.bfloat16)

        acc = jnp.zeros((MO, TN), jnp.float32)
        for t in range(9):                                # unrolled taps
            dh, dw = divmod(t, 3)
            off = dh * Wp2 + dw
            acc = acc + jnp.dot(xact[off:off + MO, :], w_ref[t],
                                preferred_element_type=jnp.float32)
        y_ref[0] = acc.astype(y_ref.dtype)

        # BN statistics over valid output columns only
        qo = lax.broadcasted_iota(jnp.int32, (MO, 1), 0)
        ro = qo // Wp2
        co = qo - ro * Wp2
        accm = jnp.where(co < W, acc, 0.0)
        sum_ref[0] = jnp.sum(accm, axis=0, keepdims=True)
        ssq_ref[0] = jnp.sum(accm * accm, axis=0, keepdims=True)

    est = _conv3_vmem_est(H, W, Cpin, CoutP, TN)
    limit = min(_VMEM_CAP - 8 * 1024 * 1024, max(VMEM_MM, int(est * 1.25)))

    yext, ssum, ssq = pl.pallas_call(
        kern,
        out_shape=(jax.ShapeDtypeStruct((Nb, MO, CoutP), jnp.bfloat16),
                   jax.ShapeDtypeStruct((Nb, 1, CoutP), jnp.float32),
                   jax.ShapeDtypeStruct((Nb, 1, CoutP), jnp.float32)),
        grid_spec=pltpu.PrefetchScalarGridSpec(
            num_scalar_prefetch=0,
            grid=(Nb, nJ),
            in_specs=[pl.BlockSpec((1, MA, Cpin), lambda n, j: (n, 0, 0)),
                      pl.BlockSpec((9, Cpin, TN), lambda n, j: (0, 0, j)),
                      pl.BlockSpec((1, Cpin), lambda n, j: (0, 0)),
                      pl.BlockSpec((1, Cpin), lambda n, j: (0, 0))],
            out_specs=(pl.BlockSpec((1, MO, TN), lambda n, j: (n, 0, j)),
                       pl.BlockSpec((1, 1, TN), lambda n, j: (n, 0, j)),
                       pl.BlockSpec((1, 1, TN), lambda n, j: (n, 0, j)))),
        compiler_params=pltpu.CompilerParams(
            dimension_semantics=("parallel", "parallel"),
            vmem_limit_bytes=limit),
    )(aflat, wb, scp, shp)

    yout = yext.reshape(Nb, H, Wp2, CoutP)[:, :, :W, :]
    return yout, jnp.sum(ssum, axis=(0, 1)), jnp.sum(ssq, axis=(0, 1))


# ------------------------------------------------------------------ Pallas: activation apply / maxpool

def _apply_act_array(act):
    Nb, H, W, Cp = act.y.shape
    M = Nb * H * W
    TM = 512 if M > 512 else _ru(M, 8)
    Mp = _ru(M, TM)
    TN = _pick_tn(Cp)
    a2 = _pad2(act.y.reshape(M, Cp), Mp, Cp)
    scp = act.scale.astype(jnp.float32).reshape(1, Cp)
    shp = act.shift.astype(jnp.float32).reshape(1, Cp)
    apply_silu = act.silu

    def kern(y_ref, sc_ref, sh_ref, o_ref):
        z = y_ref[...].astype(jnp.float32) * sc_ref[...] + sh_ref[...]
        if apply_silu:
            z = z * pl.reciprocal(1.0 + jnp.exp(-z), approx=True)
        o_ref[...] = z.astype(o_ref.dtype)

    out = pl.pallas_call(
        kern,
        out_shape=jax.ShapeDtypeStruct((Mp, Cp), jnp.bfloat16),
        grid_spec=pltpu.PrefetchScalarGridSpec(
            num_scalar_prefetch=0,
            grid=(Mp // TM, Cp // TN),
            in_specs=[pl.BlockSpec((TM, TN), lambda i, j: (i, j)),
                      pl.BlockSpec((1, TN), lambda i, j: (0, j)),
                      pl.BlockSpec((1, TN), lambda i, j: (0, j))],
            out_specs=pl.BlockSpec((TM, TN), lambda i, j: (i, j))),
        compiler_params=pltpu.CompilerParams(
            dimension_semantics=("parallel", "parallel"),
            vmem_limit_bytes=VMEM_MM),
    )(a2, scp, shp)
    return out[:M].reshape(Nb, H, W, Cp)


def maxpool2d_same(xa, k):
    # MaxPool2d(kernel=k, stride=1, padding=k//2); separable max (2*(k-1) ops)
    Nb, H, W, C = xa.shape
    p = k // 2
    xp = jnp.pad(xa, ((0, 0), (p, p), (p, p), (0, 0)), constant_values=-jnp.inf)
    Hp, Wp_ = H + 2 * p, W + 2 * p

    def kern(x_ref, o_ref):
        xv = x_ref[0]
        t = xv[:, 0:W, :]
        for dw in range(1, k):
            t = jnp.maximum(t, xv[:, dw:dw + W, :])
        o = t[0:H, :, :]
        for dh in range(1, k):
            o = jnp.maximum(o, t[dh:dh + H, :, :])
        o_ref[0] = o

    return pl.pallas_call(
        kern,
        out_shape=jax.ShapeDtypeStruct((Nb, H, W, C), xa.dtype),
        grid=(Nb,),
        in_specs=[pl.BlockSpec((1, Hp, Wp_, C), lambda n: (n, 0, 0, 0))],
        out_specs=pl.BlockSpec((1, H, W, C), lambda n: (n, 0, 0, 0)),
        compiler_params=pltpu.CompilerParams(
            dimension_semantics=("parallel",),
            vmem_limit_bytes=VMEM_MM),
    )(xp)


# ------------------------------------------------------------------ Act plumbing

def identity_act(act):
    if not act.affine and not act.silu:
        return act
    ym = _apply_act_array(act)
    Cp = ym.shape[-1]
    return Act(ym, jnp.ones((Cp,), jnp.float32), jnp.zeros((Cp,), jnp.float32),
               False, False, act.segs)


def _materialize_compact(act):
    a = identity_act(act)
    if all(c == cp for c, cp in a.segs):
        return a.y
    parts, off = [], 0
    for c, cp in a.segs:
        parts.append(a.y[..., off:off + c])
        off += cp
    return parts[0] if len(parts) == 1 else jnp.concatenate(parts, axis=-1)


def concat_acts(acts):
    # TODO(synk): channel concats / upsample are still XLA data movement; folding
    # them into the consumer matmul (split-K / index_map) is a further step.
    if not all((a.silu == acts[0].silu and a.affine == acts[0].affine) for a in acts):
        acts = [identity_act(a) for a in acts]
    y = jnp.concatenate([a.y for a in acts], axis=-1)
    scale = jnp.concatenate([a.scale for a in acts])
    shift = jnp.concatenate([a.shift for a in acts])
    segs = tuple(s for a in acts for s in a.segs)
    return Act(y, scale, shift, acts[0].silu, acts[0].affine, segs)


def split_act(act, nseg):
    off = sum(cp for _, cp in act.segs[:nseg])
    a1 = Act(act.y[..., :off], act.scale[:off], act.shift[:off],
             act.silu, act.affine, act.segs[:nseg])
    a2 = Act(act.y[..., off:], act.scale[off:], act.shift[off:],
             act.silu, act.affine, act.segs[nseg:])
    return a1, a2


def upsample2x(act):
    y = jnp.repeat(jnp.repeat(act.y, 2, axis=1), 2, axis=2)
    return Act(y, act.scale, act.shift, act.silu, act.affine, act.segs)


def _im2col(x, k, s, p):
    N, H, W, C = x.shape
    if p:
        x = jnp.pad(x, ((0, 0), (p, p), (p, p), (0, 0)))
    Hp, Wp_ = H + 2 * p, W + 2 * p
    Ho = (Hp - k) // s + 1
    Wo = (Wp_ - k) // s + 1
    cols = []
    for dh in range(k):
        for dw in range(k):
            cols.append(x[:, dh:dh + s * (Ho - 1) + 1:s, dw:dw + s * (Wo - 1) + 1:s, :])
    patches = jnp.stack(cols, axis=3)
    return patches.reshape(N * Ho * Wo, k * k * C), (N, Ho, Wo)


# ------------------------------------------------------------------ Conv (+BN+SiLU) layers

def conv_fwd(cv, act, out_segs=None):
    w, gamma, beta = cv['w'], cv['gamma'], cv['beta']
    k, s, pd = cv['k'], cv['s'], cv['p']
    CoutL = w.shape[0]
    if out_segs is None:
        out_segs = ((CoutL, _ru(CoutL, LANE)),)
    CoutP = _seg_total(out_segs)
    gamma_p = _pad_vec(gamma, out_segs)
    beta_p = _pad_vec(beta, out_segs)
    Nb, H, W, Cpin = act.y.shape

    if k == 1 and s == 1:
        # 1x1: tiled matmul with producer BN+SiLU fused on the input tiles
        M = Nb * H * W
        a2 = act.y.reshape(M, Cpin)
        wm = _build_wmat(w, act.segs, out_segs)[0]
        y, ssum, ssq, _ = _mm_fused_stats(a2, wm, act.scale, act.shift,
                                          act.affine, act.silu)
        y = y[:M, :CoutP].reshape(Nb, H, W, CoutP)
        scale, shift = _bn_scale_shift(ssum[:CoutP], ssq[:CoutP], M, gamma_p, beta_p)
        return Act(y, scale, shift, True, True, out_segs)

    if (k == 3 and s == 1 and pd == 1 and Cpin % LANE == 0
            and _conv3_vmem_est(H, W, Cpin, CoutP, _pick_tn(CoutP)) <= FUSED3_BUDGET):
        wfull = _build_wmat(w, act.segs, out_segs)
        y, ssum, ssq = _conv3x3_s1_fused(act, wfull, CoutP)
        count = Nb * H * W
        scale, shift = _bn_scale_shift(ssum, ssq, count, gamma_p, beta_p)
        return Act(y, scale, shift, True, True, out_segs)

    # fallback: materialize the input activation, host-side im2col, tiled matmul.
    # TODO(synk): stride-2 3x3 convs still expand patches in HBM (2.25x of input);
    # moving the strided taps into the kernel is the remaining step.
    xm = _materialize_compact(act)
    CL = xm.shape[-1]
    lsegs = tuple((c, c) for c, _ in act.segs)
    wm = _build_wmat(w, lsegs, out_segs).reshape(k * k * CL, CoutP)
    patches, (nb, Ho, Wo) = _im2col(xm, k, s, pd)
    M = nb * Ho * Wo
    dummy = jnp.zeros((patches.shape[1],), jnp.float32)
    y, ssum, ssq, _ = _mm_fused_stats(patches, wm, dummy, dummy, False, False)
    y = y[:M, :CoutP].reshape(nb, Ho, Wo, CoutP)
    scale, shift = _bn_scale_shift(ssum[:CoutP], ssq[:CoutP], M, gamma_p, beta_p)
    return Act(y, scale, shift, True, True, out_segs)


def conv1x1_bias_fwd(branch, act):
    w, b = branch['w'], branch['b']
    CoutL = w.shape[0]
    Nb, H, W, Cpin = act.y.shape
    M = Nb * H * W
    a2 = act.y.reshape(M, Cpin)
    wm = _build_wmat(w, act.segs, ((CoutL, CoutL),))[0]
    out = _mm_bias_fused(a2, wm, b, act.scale, act.shift, act.affine, act.silu)
    return out[:M, :CoutL].reshape(Nb, H, W, CoutL)


# ------------------------------------------------------------------ parameter builders

class _KeyGen:
    def __init__(self, seed):
        self._key = jax.random.PRNGKey(seed)

    def __call__(self):
        self._key, sub = jax.random.split(self._key)
        return sub


def conv_block_params(kg, c1, c2, k=1, s=1):
    std = 1.0 / math.sqrt(c1 * k * k)
    return {'w': jax.random.normal(kg(), (c2, c1, k, k), jnp.float32) * std,
            'gamma': jnp.ones((c2,), jnp.float32),
            'beta': jnp.zeros((c2,), jnp.float32),
            'k': k, 's': s, 'p': k // 2}


def triple_conv_params(kg, c1, c2, k, s):
    # TODO(synk): TripleInputConv definition is not in the reference file; implemented as
    # three parallel Conv branches over the (shared) input + 1x1 fusion Conv.
    return {'b1': conv_block_params(kg, c1, c2, k, s),
            'b2': conv_block_params(kg, c1, c2, k, s),
            'b3': conv_block_params(kg, c1, c2, k, s),
            'fuse': conv_block_params(kg, 3 * c2, c2, 1, 1)}


def triple_conv_fwd(p, act):
    # three branches share the same input -> one fused wide matmul (BN is per-channel)
    b1, b2, b3 = p['b1'], p['b2'], p['b3']
    c2 = b1['w'].shape[0]
    cp = _ru(c2, LANE)
    merged = {'w': jnp.concatenate([b1['w'], b2['w'], b3['w']], axis=0),
              'gamma': jnp.concatenate([b1['gamma'], b2['gamma'], b3['gamma']]),
              'beta': jnp.concatenate([b1['beta'], b2['beta'], b3['beta']]),
              'k': b1['k'], 's': b1['s'], 'p': b1['p']}
    y = conv_fwd(merged, act, out_segs=((c2, cp),) * 3)
    return conv_fwd(p['fuse'], y)


def c2f_params(kg, c1, c2, n):
    c = int(c2 * 0.5)
    return {'c': c,
            'cv1': conv_block_params(kg, c1, 2 * c, 1, 1),
            'cv2': conv_block_params(kg, (2 + n) * c, c2, 1, 1),
            'm': [{'cv1': conv_block_params(kg, c, c, 3, 1),
                   'cv2': conv_block_params(kg, c, c, 3, 1)} for _ in range(n)]}


def c2f_fwd(p, act):
    c = p['c']
    cp = _ru(c, LANE)
    y = conv_fwd(p['cv1'], act, out_segs=((c, cp), (c, cp)))
    _, cur = split_act(y, 1)
    parts = [y]
    for m in p['m']:          # shortcut=False (C2f default)
        h = conv_fwd(m['cv1'], cur)
        h = conv_fwd(m['cv2'], h)
        parts.append(h)
        cur = h
    return conv_fwd(p['cv2'], concat_acts(parts))


def sppf_params(kg, c1, c2, k=5):
    c_ = c1 // 2
    return {'k': k,
            'cv1': conv_block_params(kg, c1, c_, 1, 1),
            'cv2': conv_block_params(kg, c_ * 4, c2, 1, 1)}


def sppf_fwd(p, act):
    x = conv_fwd(p['cv1'], act)
    xi = identity_act(x)                       # max-pool needs post-activation values
    k = p['k']
    y1y = maxpool2d_same(xi.y, k)
    y2y = maxpool2d_same(y1y, k)
    y3y = maxpool2d_same(y2y, k)
    mk = lambda yy: Act(yy, xi.scale, xi.shift, False, False, xi.segs)
    return conv_fwd(p['cv2'], concat_acts([xi, mk(y1y), mk(y2y), mk(y3y)]))


def detect_params(kg, nc, ch):
    reg_max = 16
    c2 = max(16, ch[0] // 4, reg_max * 4)
    c3 = max(ch[0], min(nc, 100))

    def branch(cin, cmid, cout):
        std = 1.0 / math.sqrt(cmid)
        return {'c0': conv_block_params(kg, cin, cmid, 3, 1),
                'c1': conv_block_params(kg, cmid, cmid, 3, 1),
                'w': jax.random.normal(kg(), (cout, cmid, 1, 1), jnp.float32) * std,
                'b': jnp.zeros((cout,), jnp.float32)}

    return {'c2': c2, 'c3': c3,
            'cv2': [branch(x, c2, 4 * reg_max) for x in ch],
            'cv3': [branch(x, c3, nc) for x in ch]}


def detect_fwd(p, feats):
    # training-mode Detect: per-level cat(box, cls) feature maps
    c2, c3 = p['c2'], p['c3']
    cp2, cp3 = _ru(c2, LANE), _ru(c3, LANE)
    outs = []
    for i, x in enumerate(feats):
        br2, br3 = p['cv2'][i], p['cv3'][i]
        # cv2.c0 and cv3.c0 share the same input -> one fused wide 3x3 conv
        merged = {'w': jnp.concatenate([br2['c0']['w'], br3['c0']['w']], axis=0),
                  'gamma': jnp.concatenate([br2['c0']['gamma'], br3['c0']['gamma']]),
                  'beta': jnp.concatenate([br2['c0']['beta'], br3['c0']['beta']]),
                  'k': 3, 's': 1, 'p': 1}
        y0 = conv_fwd(merged, x, out_segs=((c2, cp2), (c3, cp3)))
        yb, yc = split_act(y0, 1)

        b = conv_fwd(br2['c1'], yb)
        bo = conv1x1_bias_fwd(br2, b)
        c = conv_fwd(br3['c1'], yc)
        co = conv1x1_bias_fwd(br3, c)
        outs.append(jnp.concatenate([bo, co], axis=-1))
    return outs


# ------------------------------------------------------------------ model

def build_params(variant='n', nc=80, seed=42):
    cfg = MODEL_VARIANTS[variant]
    dm, wm, mc = cfg['depth_multiple'], cfg['width_multiple'], cfg['max_channels']

    def ml(cout, n=1):
        return min(mc, int(cout * wm)), max(1, int(n * dm))

    ch64, _ = ml(64)
    ch128, _ = ml(128)
    ch256, b1 = ml(256, 3)
    ch512, b2 = ml(512, 6)
    ch1024, b3 = ml(1024, 3)
    head_ch512, head_blocks = ml(512, 3)
    head_ch256, head_blocks = ml(256, 3)

    kg = _KeyGen(seed)
    return {
        'conv0': triple_conv_params(kg, 3, 64, 3, 2),
        'conv1': conv_block_params(kg, 64, ch128, 3, 2),
        'c2f1': c2f_params(kg, ch128, ch128, b1),
        'conv2': conv_block_params(kg, ch128, ch256, 3, 2),
        'c2f2': c2f_params(kg, ch256, ch256, b2),
        'conv3': conv_block_params(kg, ch256, ch512, 3, 2),
        'c2f3': c2f_params(kg, ch512, ch512, b2),
        'conv4': conv_block_params(kg, ch512, ch1024, 3, 2),
        'c2f4': c2f_params(kg, ch1024, ch1024, b3),
        'sppf': sppf_params(kg, ch1024, ch1024, 5),
        'c2f_head1': c2f_params(kg, ch1024 + ch512, head_ch512, head_blocks),
        'c2f_head2': c2f_params(kg, head_ch512 + ch256, head_ch256, head_blocks),
        'conv_head1': conv_block_params(kg, head_ch256, head_ch256, 3, 2),
        'c2f_head3': c2f_params(kg, head_ch256 + head_ch512, head_ch512, head_blocks),
        'conv_head2': conv_block_params(kg, head_ch512, head_ch512, 3, 2),
        'c2f_head4': c2f_params(kg, head_ch512 + ch1024, ch1024, head_blocks),
        'detect': detect_params(kg, nc, [head_ch256, head_ch512, ch1024]),
    }


def model_forward(params, x_nchw):
    # NCHW -> NHWC; activations are bf16, matmul accumulation / BN stats are f32
    x = jnp.transpose(x_nchw, (0, 2, 3, 1)).astype(jnp.bfloat16)
    C = x.shape[-1]
    act = Act(x, jnp.ones((C,), jnp.float32), jnp.zeros((C,), jnp.float32),
              False, False, ((C, C),))

    x0 = triple_conv_fwd(params['conv0'], act)
    x1 = c2f_fwd(params['c2f1'], conv_fwd(params['conv1'], x0))
    x2 = c2f_fwd(params['c2f2'], conv_fwd(params['conv2'], x1))
    x3 = c2f_fwd(params['c2f3'], conv_fwd(params['conv3'], x2))
    x4 = c2f_fwd(params['c2f4'], conv_fwd(params['conv4'], x3))
    x4 = sppf_fwd(params['sppf'], x4)

    p5 = x4
    p4 = c2f_fwd(params['c2f_head1'], concat_acts([upsample2x(p5), x3]))
    p3 = c2f_fwd(params['c2f_head2'], concat_acts([upsample2x(p4), x2]))

    p4_down = conv_fwd(params['conv_head1'], p3)
    p4 = c2f_fwd(params['c2f_head3'], concat_acts([p4_down, p4]))
    p5_down = conv_fwd(params['conv_head2'], p4)
    p5 = c2f_fwd(params['c2f_head4'], concat_acts([p5_down, p5]))

    outs = detect_fwd(params['detect'], [p3, p4, p5])
    return [jnp.transpose(o, (0, 3, 1, 2)).astype(jnp.float32) for o in outs]  # NCHW f32


# ------------------------------------------------------------------ main

if __name__ == "__main__":
    B, H, W = 2, 64, 64   # smallest spatial size keeping all FPN scales >= 2
    key = jax.random.PRNGKey(0)
    x = jax.random.normal(key, (B, 3, H, W), jnp.float32)

    params = build_params('n', nc=80, seed=42)
    outs = model_forward(params, x)
    outs = jax.block_until_ready(outs)

    no = 4 * 16 + 80      # reg_max*4 + nc
    assert outs[0].shape == (B, no, H // 8, W // 8)
    assert outs[1].shape == (B, no, H // 16, W // 16)
    assert outs[2].shape == (B, no, H // 32, W // 32)
    assert all(bool(jnp.all(jnp.isfinite(o))) for o in outs)

    print("KERNEL_OK")
</pallas_src>

<mosaic_0001>
module attributes {stable_mosaic.version = 11 : i64} {
  func.func @kern(%arg0: i32, %arg1: i32, %arg2: i32, %arg3: memref<512x128xbf16, #tpu.memory_space<vmem>>, %arg4: memref<128x128xbf16, #tpu.memory_space<vmem>>, %arg5: memref<1x128xf32, #tpu.memory_space<vmem>>, %arg6: memref<1x128xf32, #tpu.memory_space<vmem>>, %arg7: memref<512x128xbf16, #tpu.memory_space<vmem>>, %arg8: memref<1x8x128xf32, #tpu.memory_space<vmem>>, %arg9: memref<1x8x128xf32, #tpu.memory_space<vmem>>, %arg10: memref<512x128xf32, #tpu.memory_space<vmem>>) attributes {dimension_semantics = [#tpu.dimension_semantics<parallel>, #tpu.dimension_semantics<parallel>, #tpu.dimension_semantics<arbitrary>], iteration_bounds = array<i64: 4, 3, 1>, scalar_prefetch = 0 : i64, scratch_operands = 1 : i64, tpu.core_type = #tpu.core_type<tc>, window_params = [{transform_indices = @transform_0, window_bounds = array<i64: 512, 128>}, {transform_indices = @transform_1, window_bounds = array<i64: 128, 128>}, {transform_indices = @transform_2, window_bounds = array<i64: 1, 128>}, {transform_indices = @transform_3, window_bounds = array<i64: 1, 128>}, {transform_indices = @transform_4, window_bounds = array<i64: 512, 128>}, {transform_indices = @transform_5, window_bounds = array<i64: 1, 8, 128>}, {transform_indices = @transform_6, window_bounds = array<i64: 1, 8, 128>}]} {
    %c0_i32 = arith.constant 0 : i32
    %0 = arith.cmpi eq, %arg2, %c0_i32 : i32
    %1 = arith.extui %0 : i1 to i32
    %c0_i32_0 = arith.constant 0 : i32
    %2 = arith.cmpi ne, %1, %c0_i32_0 : i32
    scf.if %2 {
      %cst_10 = arith.constant 0.000000e+00 : f32
      %12 = vector.broadcast %cst_10 : f32 to vector<512x128xf32>
      %c0_11 = arith.constant 0 : index
      %c0_12 = arith.constant 0 : index
      %13 = vector.load %arg10[%c0_11, %c0_12] : memref<512x128xf32, #tpu.memory_space<vmem>>, vector<512x128xf32>
      tpu.vector_store %arg10[%c0_11, %c0_12], %12 {strides = array<i32>} : memref<512x128xf32, #tpu.memory_space<vmem>>, vector<512x128xf32>,
    } else {
    }
    %c0 = arith.constant 0 : index
    %c0_1 = arith.constant 0 : index
    %3 = vector.load %arg3[%c0, %c0_1] : memref<512x128xbf16, #tpu.memory_space<vmem>>, vector<512x128xbf16>
    %c0_2 = arith.constant 0 : index
    %c0_3 = arith.constant 0 : index
    %4 = vector.load %arg10[%c0_2, %c0_3] : memref<512x128xf32, #tpu.memory_space<vmem>>, vector<512x128xf32>
    %c0_4 = arith.constant 0 : index
    %c0_5 = arith.constant 0 : index
    %5 = vector.load %arg4[%c0_4, %c0_5] : memref<128x128xbf16, #tpu.memory_space<vmem>>, vector<128x128xbf16>
    %cst = arith.constant dense<0.000000e+00> : vector<512x128xf32>
    %6 = tpu.matmul %3, %5, %cst {dimension_numbers = #tpu.dot_dimension_numbers<[1], [0], [0], [1], [0, 0, 1, 1], [], []>} : vector<512x128xbf16>, vector<128x128xbf16>, vector<512x128xf32> -> vector<512x128xf32>
    %7 = arith.addf %4, %6 : vector<512x128xf32>
    %c0_6 = arith.constant 0 : index
    %c0_7 = arith.constant 0 : index
    %8 = vector.load %arg10[%c0_6, %c0_7] : memref<512x128xf32, #tpu.memory_space<vmem>>, vector<512x128xf32>
    tpu.vector_store %arg10[%c0_6, %c0_7], %7 {strides = array<i32>} : memref<512x128xf32, #tpu.memory_space<vmem>>, vector<512x128xf32>,
    %c0_i32_8 = arith.constant 0 : i32
    %9 = arith.cmpi eq, %arg2, %c0_i32_8 : i32
    %10 = arith.extui %9 : i1 to i32
    %c0_i32_9 = arith.constant 0 : i32
    %11 = arith.cmpi ne, %10, %c0_i32_9 : i32
    scf.if %11 {
      %c0_10 = arith.constant 0 : index
      %c0_11 = arith.constant 0 : index
      %12 = vector.load %arg10[%c0_10, %c0_11] : memref<512x128xf32, #tpu.memory_space<vmem>>, vector<512x128xf32>
      %13 = arith.truncf %12 : vector<512x128xf32> to vector<512x128xbf16>
      %c0_12 = arith.constant 0 : index
      %c0_13 = arith.constant 0 : index
      %14 = vector.load %arg7[%c0_12, %c0_13] : memref<512x128xbf16, #tpu.memory_space<vmem>>, vector<512x128xbf16>
      tpu.vector_store %arg7[%c0_12, %c0_13], %13 {strides = array<i32>} : memref<512x128xbf16, #tpu.memory_space<vmem>>, vector<512x128xbf16>,
      %15 = tpu.iota {dimensions = array<i32: 0>} : vector<512x1xi32>
      %c512_i32 = arith.constant 512 : i32
      %16 = arith.muli %arg0, %c512_i32 : i32
      %17 = vector.broadcast %16 : i32 to vector<512x1xi32>
      %18 = arith.addi %15, %17 : vector<512x1xi32>
      %c2048_i32 = arith.constant 2048 : i32
      %19 = vector.broadcast %c2048_i32 : i32 to vector<512x1xi32>
      %20 = arith.cmpi slt, %18, %19 : vector<512x1xi32>
      %cst_14 = arith.constant 0.000000e+00 : f32
      %21 = vector.shape_cast %20 : vector<512x1xi1> to vector<512x1xi1>
      %22 = vector.broadcast %21 : vector<512x1xi1> to vector<512x128xi1>
      %23 = vector.broadcast %cst_14 : f32 to vector<512x128xf32>
      %24 = arith.select %22, %12, %23 : vector<512x128xi1>, vector<512x128xf32>
      %cst_15 = arith.constant dense<0.000000e+00> : vector<128xf32>
      %25 = vector.multi_reduction <add>, %24, %cst_15 [0] : vector<512x128xf32> to vector<128xf32>
      %26 = vector.shape_cast %25 : vector<128xf32> to vector<1x128xf32>
      %27 = arith.mulf %24, %24 : vector<512x128xf32>
      %cst_16 = arith.constant dense<0.000000e+00> : vector<128xf32>
      %28 = vector.multi_reduction <add>, %27, %cst_16 [0] : vector<512x128xf32> to vector<128xf32>
      %29 = vector.shape_cast %28 : vector<128xf32> to vector<1x128xf32>
      %30 = vector.shape_cast %26 : vector<1x128xf32> to vector<1x1x128xf32>
      %31 = vector.broadcast %30 : vector<1x1x128xf32> to vector<1x8x128xf32>
      %c0_17 = arith.constant 0 : index
      %c0_18 = arith.constant 0 : index
      %c0_19 = arith.constant 0 : index
      %32 = vector.load %arg8[%c0_17, %c0_18, %c0_19] : memref<1x8x128xf32, #tpu.memory_space<vmem>>, vector<1x8x128xf32>
      tpu.vector_store %arg8[%c0_17, %c0_18, %c0_19], %31 {strides = array<i32>} : memref<1x8x128xf32, #tpu.memory_space<vmem>>, vector<1x8x128xf32>,
      %33 = vector.shape_cast %29 : vector<1x128xf32> to vector<1x1x128xf32>
      %34 = vector.broadcast %33 : vector<1x1x128xf32> to vector<1x8x128xf32>
      %c0_20 = arith.constant 0 : index
      %c0_21 = arith.constant 0 : index
      %c0_22 = arith.constant 0 : index
      %35 = vector.load %arg9[%c0_20, %c0_21, %c0_22] : memref<1x8x128xf32, #tpu.memory_space<vmem>>, vector<1x8x128xf32>
      tpu.vector_store %arg9[%c0_20, %c0_21, %c0_22], %34 {strides = array<i32>} : memref<1x8x128xf32, #tpu.memory_space<vmem>>, vector<1x8x128xf32>,
    } else {
    }
    return
  }
  func.func @transform_0(%arg0: i32, %arg1: i32, %arg2: i32) -> (i32, i32) {
    %c0_i32 = arith.constant 0 : i32
    return %arg0, %arg2 : i32, i32
  }
  func.func @transform_1(%arg0: i32, %arg1: i32, %arg2: i32) -> (i32, i32) {
    %c0_i32 = arith.constant 0 : i32
    return %arg2, %arg1 : i32, i32
  }
  func.func @transform_2(%arg0: i32, %arg1: i32, %arg2: i32) -> (i32, i32) {
    %c0_i32 = arith.constant 0 : i32
    %c0_i32_0 = arith.constant 0 : i32
    return %c0_i32, %arg2 : i32, i32
  }
  func.func @transform_3(%arg0: i32, %arg1: i32, %arg2: i32) -> (i32, i32) {
    %c0_i32 = arith.constant 0 : i32
    %c0_i32_0 = arith.constant 0 : i32
    return %c0_i32, %arg2 : i32, i32
  }
  func.func @transform_4(%arg0: i32, %arg1: i32, %arg2: i32) -> (i32, i32) {
    %c0_i32 = arith.constant 0 : i32
    return %arg0, %arg1 : i32, i32
  }
  func.func @transform_5(%arg0: i32, %arg1: i32, %arg2: i32) -> (i32, i32, i32) {
    %c0_i32 = arith.constant 0 : i32
    %c0_i32_0 = arith.constant 0 : i32
    return %arg0, %c0_i32, %arg1 : i32, i32, i32
  }
  func.func @transform_6(%arg0: i32, %arg1: i32, %arg2: i32) -> (i32, i32, i32) {
    %c0_i32 = arith.constant 0 : i32
    %c0_i32_0 = arith.constant 0 : i32
    return %arg0, %c0_i32, %arg1 : i32, i32, i32
  }
}

</mosaic_0001>

<llo_original>
// kernel: tpu_custom_call.1
$region0: #{tpu_custom_call.1}
  #allocation0 [shape = 'u32[]', space=smem, size = 0x4, offset = 0x4, fixed_abs, tag = 'smem constant byte address 0x4 - core index']
  #allocation1 [shape = 'u32[144,128]{1,0:T(1,128)}', space=vmem, size = 0x12000, scoped, tag = 'internal scratch']
  #allocation2 [shape = 'f32[512,128]{1,0:T(8,128)}', space=vmem, size = 0x40000, scoped, tag = 'scratch operand']
  %s0 = inlined_call_operand.hbm [shape: bf16[2048,128], index: 0, kind: input, shape index: {}]
  %s1 = inlined_call_operand.hbm [shape: bf16[128,384], index: 1, kind: input, shape index: {}]
  %s2 = inlined_call_operand.hbm [shape: f32[1,128], index: 2, kind: input, shape index: {}]
  %s3 = inlined_call_operand.hbm [shape: f32[1,128], index: 3, kind: input, shape index: {}]
  %s4 = inlined_call_operand.hbm [shape: bf16[2048,384], index: 4, kind: output, shape index: {0}]
  %s5 = inlined_call_operand.hbm [shape: f32[4,8,384], index: 5, kind: output, shape index: {1}]
  %s6 = inlined_call_operand.hbm [shape: f32[4,8,384], index: 6, kind: output, shape index: {2}]
  %7 = xla_tuple %s4, %s5, %s6
  %s8 = sld [smem:[#allocation0]]
  $region89: #{tpu_custom_call.1} parent=0
    _
  %s10 = ssub.s32 1, %s8
  %s11 = scalar_select 0, %s10, %s8
  $region1: #{tpu_custom_call.1} parent=0
    #allocation3 [shape = 'u8[262144]{0}', space=vmem, size = 0x40000, scoped, tag = 'input window, operand 0']
    #allocation4 [shape = 's32[2]{0}', space=sflag, size = 0x8, scoped, tag = 'scoped memory for tpu_custom_call.1']
    #allocation5 [shape = 's32[2]{0}', space=sflag, size = 0x8, scoped, tag = 'scoped memory for tpu_custom_call.1']
    #allocation6 [shape = 'u8[65536]{0}', space=vmem, size = 0x10000, scoped, tag = 'input window, operand 1']
    #allocation7 [shape = 's32[2]{0}', space=sflag, size = 0x8, scoped, tag = 'scoped memory for tpu_custom_call.1']
    #allocation8 [shape = 'u8[512]{0}', space=vmem, size = 0x400, scoped, tag = 'input window, operand 2, single buffered']
    #allocation9 [shape = 'u8[512]{0}', space=vmem, size = 0x400, scoped, tag = 'input window, operand 3, single buffered']
    #allocation10 [shape = 's32[1]{0}', space=sflag, size = 0x4, scoped, tag = 'scoped memory for tpu_custom_call.1']
    #allocation11 [shape = 'u8[262144]{0}', space=vmem, size = 0x40000, scoped, tag = 'output window, operand 0']
    #allocation12 [shape = 'u8[8192]{0}', space=vmem, size = 0x2000, scoped, tag = 'output window, operand 1']
    #allocation13 [shape = 's32[2]{0}', space=sflag, size = 0x8, scoped, tag = 'scoped memory for tpu_custom_call.1']
    #allocation14 [shape = 'u8[8192]{0}', space=vmem, size = 0x2000, scoped, tag = 'output window, operand 2']
    %12 = vsyncpa [#allocation4], 0
    %s13 = scalar_lea.sflag [#allocation4], 1
    %14 = vsyncpa %s13, 0
    %15 = vsyncpa [#allocation7], 0
    %s16 = scalar_lea.sflag [#allocation7], 1
    %17 = vsyncpa %s16, 0
    %18 = vsyncpa [#allocation10], 0
    %19 = vsyncpa [#allocation5], 0
    %s20 = scalar_lea.sflag [#allocation5], 1
    %21 = vsyncpa %s20, 0
    %22 = vsyncpa [#allocation13], 0
    %s23 = scalar_lea.sflag [#allocation13], 1
    %24 = vsyncpa %s23, 0
    loop: start=0, step=1, limit=14
    $region2: #{tpu_custom_call.1} parent=1 // loop_pre_header
      _
    $region3: #{tpu_custom_call.1} parent=1 // loop_header
      %s26 = sphi 0, %s30
      %p27 = scmp.ge.s32.totalorder %s26, 14
      %s33 = sphi 0, %s52
      %s34 = sphi 0, %s48
      %s35 = sphi 0, %s44
      %s36 = sphi 0, %s33
      %s37 = sphi 0, %s34
      %s38 = sphi 0, %s35
      %s39 = sphi 0, %s36
      %s40 = sphi 0, %s37
      %s41 = sphi 0, %s38
      %s57 = sphi 0, %s59
      %s60 = sphi 0, %s57
      %s61 = sphi 0, %s60
      %s77 = sphi 0, %s61
      %s85 = sphi 0, %s87
      %s88 = sphi 0, %s85
      %s89 = sphi 0, %s88
      %s105 = sphi 0, %s89
      %s111 = sphi 0, %s113
      %s114 = sphi 0, %s111
      %s115 = sphi 0, %s114
      %s131 = sphi 0, %s115
      %s137 = sphi 0, %s139
      %s140 = sphi 0, %s137
      %s141 = sphi 0, %s140
      %s157 = sphi 0, %s141
      %s165 = sphi 0, %s167
      %s168 = sphi 0, %s165
      %s169 = sphi 0, %s168
      %s185 = sphi 0, %s169
      %s193 = sphi 0, %s195
      %s196 = sphi 0, %s193
      %s197 = sphi 0, %s196
      %s213 = sphi 0, %s197
      %s221 = sphi 0, %s223
      %s224 = sphi 0, %s221
      %s225 = sphi 0, %s224
      %s241 = sphi 0, %s225
    $region4: #{tpu_custom_call.1} parent=1 // loop_header_branch
      %29 = sbr.rel (%p27) target = $region8
    $region5: #{tpu_custom_call.1} parent=1 // loop_body
      %s31 = ssub.s32 %s26, 1
      %s32 = ssub.s32 %s26, 2
      %s42 = sadd.s32 1, %s35
      %p43 = scmp.ge.s32.totalorder %s42, 1
      %s44 = scalar_select %p43, 0, %s42
      %s45 = sadd.s32 1, %s34
      %s46 = scalar_select %p43, %s45, %s34
      %p47 = scmp.ge.s32.totalorder %s46, 3
      %s48 = scalar_select %p47, 0, %s46
      %s49 = sadd.s32 1, %s33
      %s50 = scalar_select %p47, %s49, %s33
      %p51 = scmp.ge.s32.totalorder %s50, 4
      %s52 = scalar_select %p51, 0, %s50
      %s53 = ssub.s32 %s33, %s52
      %s54 = ssub.s32 %s35, %s44
      %s55 = sor.u32 %s53, %s54
      %p56 = scmp.eq.s32.totalorder %s55, 0
      %s58 = sadd.s32 %s57, 1
      %s59 = scalar_select %p56, %s57, %s58
      %p62 = pneg %p56
      %p63 = scmp.eq.s32.totalorder %s26, 11
      %p64 = por %p62, %p63
      %p65 = scmp.ne.s32.totalorder %s57, %s60
      %p66 = scmp.eq.s32.totalorder %s26, 0
      %p67 = por %p65, %p66
      %p68 = scmp.ne.s32.totalorder %s57, %s60
      %p69 = scmp.eq.s32.totalorder %s31, 11
      %p70 = por %p68, %p69
      %p71 = scmp.ne.s32.totalorder %s60, %s61
      %p72 = scmp.eq.s32.totalorder %s31, 0
      %p73 = por %p71, %p72
      %p74 = scmp.ne.s32.totalorder %s60, %s61
      %p75 = scmp.eq.s32.totalorder %s32, 11
      %p76 = por %p74, %p75
      %p78 = scmp.ne.s32.totalorder %s61, %s77
      %p79 = scmp.eq.s32.totalorder %s32, 0
      %p80 = por %p78, %p79
      %s81 = ssub.s32 %s35, %s44
      %s82 = ssub.s32 %s34, %s48
      %s83 = sor.u32 %s81, %s82
      %p84 = scmp.eq.s32.totalorder %s83, 0
      %s86 = sadd.s32 %s85, 1
      %s87 = scalar_select %p84, %s85, %s86
      %p90 = pneg %p84
      %p91 = scmp.eq.s32.totalorder %s26, 11
      %p92 = por %p90, %p91
      %p93 = scmp.ne.s32.totalorder %s85, %s88
      %p94 = scmp.eq.s32.totalorder %s26, 0
      %p95 = por %p93, %p94
      %p96 = scmp.ne.s32.totalorder %s85, %s88
      %p97 = scmp.eq.s32.totalorder %s31, 11
      %p98 = por %p96, %p97
      %p99 = scmp.ne.s32.totalorder %s88, %s89
      %p100 = scmp.eq.s32.totalorder %s31, 0
      %p101 = por %p99, %p100
      %p102 = scmp.ne.s32.totalorder %s88, %s89
      %p103 = scmp.eq.s32.totalorder %s32, 11
      %p104 = por %p102, %p103
      %p106 = scmp.ne.s32.totalorder %s89, %s105
      %p107 = scmp.eq.s32.totalorder %s32, 0
      %p108 = por %p106, %p107
      %s109 = ssub.s32 %s35, %s44
      %p110 = scmp.eq.s32.totalorder %s109, 0
      %s112 = sadd.s32 %s111, 1
      %s113 = scalar_select %p110, %s111, %s112
      %p116 = pneg %p110
      %p117 = scmp.eq.s32.totalorder %s26, 11
      %p118 = por %p116, %p117
      %p119 = scmp.ne.s32.totalorder %s111, %s114
      %p120 = scmp.eq.s32.totalorder %s26, 0
      %p121 = por %p119, %p120
      %p122 = scmp.ne.s32.totalorder %s111, %s114
      %p123 = scmp.eq.s32.totalorder %s31, 11
      %p124 = por %p122, %p123
      %p125 = scmp.ne.s32.totalorder %s114, %s115
      %p126 = scmp.eq.s32.totalorder %s31, 0
      %p127 = por %p125, %p126
      %p128 = scmp.ne.s32.totalorder %s114, %s115
      %p129 = scmp.eq.s32.totalorder %s32, 11
      %p130 = por %p128, %p129
      %p132 = scmp.ne.s32.totalorder %s115, %s131
      %p133 = scmp.eq.s32.totalorder %s32, 0
      %p134 = por %p132, %p133
      %s135 = ssub.s32 %s35, %s44
      %p136 = scmp.eq.s32.totalorder %s135, 0
      %s138 = sadd.s32 %s137, 1
      %s139 = scalar_select %p136, %s137, %s138
      %p142 = pneg %p136
      %p143 = scmp.eq.s32.totalorder %s26, 11
      %p144 = por %p142, %p143
      %p145 = scmp.ne.s32.totalorder %s137, %s140
      %p146 = scmp.eq.s32.totalorder %s26, 0
      %p147 = por %p145, %p146
      %p148 = scmp.ne.s32.totalorder %s137, %s140
      %p149 = scmp.eq.s32.totalorder %s31, 11
      %p150 = por %p148, %p149
      %p151 = scmp.ne.s32.totalorder %s140, %s141
      %p152 = scmp.eq.s32.totalorder %s31, 0
      %p153 = por %p151, %p152
      %p154 = scmp.ne.s32.totalorder %s140, %s141
      %p155 = scmp.eq.s32.totalorder %s32, 11
      %p156 = por %p154, %p155
      %p158 = scmp.ne.s32.totalorder %s141, %s157
      %p159 = scmp.eq.s32.totalorder %s32, 0
      %p160 = por %p158, %p159
      %s161 = ssub.s32 %s33, %s52
      %s162 = ssub.s32 %s34, %s48
      %s163 = sor.u32 %s161, %s162
      %p164 = scmp.eq.s32.totalorder %s163, 0
      %s166 = sadd.s32 %s165, 1
      %s167 = scalar_select %p164, %s165, %s166
      %p170 = pneg %p164
      %p171 = scmp.eq.s32.totalorder %s26, 11
      %p172 = por %p170, %p171
      %p173 = scmp.ne.s32.totalorder %s165, %s168
      %p174 = scmp.eq.s32.totalorder %s26, 0
      %p175 = por %p173, %p174
      %p176 = scmp.ne.s32.totalorder %s165, %s168
      %p177 = scmp.eq.s32.totalorder %s31, 11
      %p178 = por %p176, %p177
      %p179 = scmp.ne.s32.totalorder %s168, %s169
      %p180 = scmp.eq.s32.totalorder %s31, 0
      %p181 = por %p179, %p180
      %p182 = scmp.ne.s32.totalorder %s168, %s169
      %p183 = scmp.eq.s32.totalorder %s32, 11
      %p184 = por %p182, %p183
      %p186 = scmp.ne.s32.totalorder %s169, %s185
      %p187 = scmp.eq.s32.totalorder %s32, 0
      %p188 = por %p186, %p187
      %s189 = ssub.s32 %s33, %s52
      %s190 = ssub.s32 %s34, %s48
      %s191 = sor.u32 %s189, %s190
      %p192 = scmp.eq.s32.totalorder %s191, 0
      %s194 = sadd.s32 %s193, 1
      %s195 = scalar_select %p192, %s193, %s194
      %p198 = pneg %p192
      %p199 = scmp.eq.s32.totalorder %s26, 11
      %p200 = por %p198, %p199
      %p201 = scmp.ne.s32.totalorder %s193, %s196
      %p202 = scmp.eq.s32.totalorder %s26, 0
      %p203 = por %p201, %p202
      %p204 = scmp.ne.s32.totalorder %s193, %s196
      %p205 = scmp.eq.s32.totalorder %s31, 11
      %p206 = por %p204, %p205
      %p207 = scmp.ne.s32.totalorder %s196, %s197
      %p208 = scmp.eq.s32.totalorder %s31, 0
      %p209 = por %p207, %p208
      %p210 = scmp.ne.s32.totalorder %s196, %s197
      %p211 = scmp.eq.s32.totalorder %s32, 11
      %p212 = por %p210, %p211
      %p214 = scmp.ne.s32.totalorder %s197, %s213
      %p215 = scmp.eq.s32.totalorder %s32, 0
      %p216 = por %p214, %p215
      %s217 = ssub.s32 %s33, %s52
      %s218 = ssub.s32 %s34, %s48
      %s219 = sor.u32 %s217, %s218
      %p220 = scmp.eq.s32.totalorder %s219, 0
      %s222 = sadd.s32 %s221, 1
      %s223 = scalar_select %p220, %s221, %s222
      %p226 = pneg %p220
      %p227 = scmp.eq.s32.totalorder %s26, 11
      %p228 = por %p226, %p227
      %p229 = scmp.ne.s32.totalorder %s221, %s224
      %p230 = scmp.eq.s32.totalorder %s26, 0
      %p231 = por %p229, %p230
      %p232 = scmp.ne.s32.totalorder %s221, %s224
      %p233 = scmp.eq.s32.totalorder %s31, 11
      %p234 = por %p232, %p233
      %p235 = scmp.ne.s32.totalorder %s224, %s225
      %p236 = scmp.eq.s32.totalorder %s31, 0
      %p237 = por %p235, %p236
      %p238 = scmp.ne.s32.totalorder %s224, %s225
      %p239 = scmp.eq.s32.totalorder %s32, 11
      %p240 = por %p238, %p239
      %p242 = scmp.ne.s32.totalorder %s225, %s241
      %p243 = scmp.eq.s32.totalorder %s32, 0
      %p244 = por %p242, %p243
      %p245 = scmp.le.s32.totalorder 1, %s26
      %p246 = scmp.lt.s32.totalorder %s26, 13
      %p247 = pnand %p245, %p246
      %p248 = pneg %p247
      // Predicated region
      $region9: #{tpu_custom_call.1} parent=5 // pred_check
        _
      $region10: #{tpu_custom_call.1} parent=5 // pred_check_branch
        %250 = sbr.rel (%p247) target = $region12
      $region11: #{tpu_custom_call.1} parent=5 // pred_region
        %s251 = ssub.s32 %s26, 1
        // Predicated region
        $region13: #{tpu_custom_call.1} parent=11 // pred_check
          %p252 = pneg %p127
        $region14: #{tpu_custom_call.1} parent=11 // pred_check_branch
          %254 = sbr.rel (%p252) target = $region16
        $region15: #{tpu_custom_call.1} parent=11 // pred_region
          %s256 = ssub.s32 16, 16
          %257 = vsyncadd [#allocation7], %s256
          %s258 = smul.addr %s38, 16
          %s259 = scalar_lea.hbm %s2, %s258
          %s261 = sshll.u32 [#allocation8], 4
          %s262 = int_to_ptr.vmem [resolvable:$true] %s261
          %264 = dma.hbm_to_vmem [thread:$0]  %s259, 16, %s262, [#allocation7]
        $region16: #{tpu_custom_call.1} parent=11 // pred_fallthru
          _
        // Predicated region
        $region17: #{tpu_custom_call.1} parent=11 // pred_check
          %p265 = pneg %p153
        $region18: #{tpu_custom_call.1} parent=11 // pred_check_branch
          %267 = sbr.rel (%p265) target = $region20
        $region19: #{tpu_custom_call.1} parent=11 // pred_region
          %s269 = ssub.s32 16, 16
          %270 = vsyncadd [#allocation10], %s269
          %s271 = smul.addr %s38, 16
          %s272 = scalar_lea.hbm %s3, %s271
          %s274 = sshll.u32 [#allocation9], 4
          %s275 = int_to_ptr.vmem [resolvable:$true] %s274
          %277 = dma.hbm_to_vmem [thread:$0]  %s272, 16, %s275, [#allocation10]
        $region20: #{tpu_custom_call.1} parent=11 // pred_fallthru
          _
      $region12: #{tpu_custom_call.1} parent=5 // pred_fallthru
        _
      %p278 = scmp.lt.s32.totalorder %s26, 12
      // Predicated region
      $region21: #{tpu_custom_call.1} parent=5 // pred_check
        %p279 = pneg %p278
      $region22: #{tpu_custom_call.1} parent=5 // pred_check_branch
        %281 = sbr.rel (%p279) target = $region24
      $region23: #{tpu_custom_call.1} parent=5 // pred_region
        // Predicated region
        $region25: #{tpu_custom_call.1} parent=23 // pred_check
          %p282 = pneg %p67
        $region26: #{tpu_custom_call.1} parent=23 // pred_check_branch
          %284 = sbr.rel (%p282) target = $region28
        $region27: #{tpu_custom_call.1} parent=23 // pred_region
          %s285 = sand.u32 %s57, 1
          %s286 = scalar_lea.sflag [#allocation4], %s285
          %s287 = sand.u32 %s57, 1
          %s288 = smul.addr %s287, 256
          %s289 = scalar_lea.vmem [#allocation3], %s288
          %s290 = smul.u32 64, %s33
          %s292 = ssub.s32 4096, 4096
          %293 = vsyncadd %s286, %s292
          %s294 = sadd.s32 %s35, %s290
          %s295 = smul.addr %s294, 64
          %s296 = scalar_lea.hbm %s0, %s295
          %s297 = sshll.u32 %s289, 4
          %s298 = int_to_ptr.vmem [resolvable:$true] %s297
          %303 = dma.hbm_to_vmem [thread:$0]  %s296, 4096, %s298, %s286, 64, 64, 4
        $region28: #{tpu_custom_call.1} parent=23 // pred_fallthru
          _
        // Predicated region
        $region29: #{tpu_custom_call.1} parent=23 // pred_check
          %p304 = pneg %p95
        $region30: #{tpu_custom_call.1} parent=23 // pred_check_branch
          %306 = sbr.rel (%p304) target = $region32
        $region31: #{tpu_custom_call.1} parent=23 // pred_region
          %s307 = sand.u32 %s26, 1
          %s308 = scalar_lea.sflag [#allocation7], %s307
          %s309 = sand.u32 %s85, 1
          %s310 = smul.addr %s309, 64
          %s311 = scalar_lea.vmem [#allocation6], %s310
          %s312 = smul.u32 16, %s35
          %s314 = ssub.s32 1024, 1024
          %315 = vsyncadd %s308, %s314
          %s316 = smul.addr %s312, 3
          %s317 = sadd.s32 %s34, %s316
          %s318 = smul.addr %s317, 64
          %s319 = scalar_lea.hbm %s1, %s318
          %s320 = sshll.u32 %s311, 4
          %s321 = int_to_ptr.vmem [resolvable:$true] %s320
          %326 = dma.hbm_to_vmem [thread:$0]  %s319, 1024, %s321, %s308, 192, 64, 4
        $region32: #{tpu_custom_call.1} parent=23 // pred_fallthru
          _
      $region24: #{tpu_custom_call.1} parent=5 // pred_fallthru
        _
      %p327 = scmp.le.s32.totalorder 1, %s26
      %p328 = scmp.lt.s32.totalorder %s26, 13
      %p329 = pnand %p327, %p328
      %p330 = pneg %p329
      // Predicated region
      $region33: #{tpu_custom_call.1} parent=5 // pred_check
        _
      $region34: #{tpu_custom_call.1} parent=5 // pred_check_branch
        %332 = sbr.rel (%p329) target = $region36
      $region35: #{tpu_custom_call.1} parent=5 // pred_region
        %s333 = ssub.s32 %s26, 1
        %s334 = sand.u32 %s60, 1
        %s335 = scalar_lea.sflag [#allocation4], %s334
        %s336 = sand.u32 %s60, 1
        %s337 = smul.addr %s336, 256
        %s338 = scalar_lea.vmem [#allocation3], %s337
        // Predicated region
        $region37: #{tpu_custom_call.1} parent=35 // pred_check
          %p339 = pneg %p73
        $region38: #{tpu_custom_call.1} parent=35 // pred_check_branch
          %341 = sbr.rel (%p339) target = $region40
        $region39: #{tpu_custom_call.1} parent=35 // pred_region
          %342 = dma.done %s335, 4096
        $region40: #{tpu_custom_call.1} parent=35 // pred_fallthru
          _
        %s343 = sand.u32 %s31, 1
        %s344 = scalar_lea.sflag [#allocation7], %s343
        %s345 = sand.u32 %s88, 1
        %s346 = smul.addr %s345, 64
        %s347 = scalar_lea.vmem [#allocation6], %s346
        // Predicated region
        $region41: #{tpu_custom_call.1} parent=35 // pred_check
          %p348 = pneg %p101
        $region42: #{tpu_custom_call.1} parent=35 // pred_check_branch
          %350 = sbr.rel (%p348) target = $region44
        $region43: #{tpu_custom_call.1} parent=35 // pred_region
          %351 = dma.done %s344, 1024
        $region44: #{tpu_custom_call.1} parent=35 // pred_fallthru
          _
        // Predicated region
        $region45: #{tpu_custom_call.1} parent=35 // pred_check
          %p352 = pneg %p127
        $region46: #{tpu_custom_call.1} parent=35 // pred_check_branch
          %354 = sbr.rel (%p352) target = $region48
        $region47: #{tpu_custom_call.1} parent=35 // pred_region
          %355 = dma.done [#allocation7], 16
        $region48: #{tpu_custom_call.1} parent=35 // pred_fallthru
          _
        // Predicated region
        $region49: #{tpu_custom_call.1} parent=35 // pred_check
          %p356 = pneg %p153
        $region50: #{tpu_custom_call.1} parent=35 // pred_check_branch
          %358 = sbr.rel (%p356) target = $region52
        $region51: #{tpu_custom_call.1} parent=35 // pred_region
          %359 = dma.done [#allocation10], 16
        $region52: #{tpu_custom_call.1} parent=35 // pred_fallthru
          _
        %s360 = sand.u32 %s60, 1
        %s361 = scalar_lea.sflag [#allocation4], %s360
        %s362 = sand.u32 %s60, 1
        %s363 = smul.addr %s362, 256
        %s364 = scalar_lea.vmem [#allocation3], %s363
        %p365 = pneg %p73
        %p366 = pneg %p70
        %s367 = sand.u32 %s31, 1
        %s368 = scalar_lea.sflag [#allocation7], %s367
        %s369 = sand.u32 %s88, 1
        %s370 = smul.addr %s369, 64
        %s371 = scalar_lea.vmem [#allocation6], %s370
        %p372 = pneg %p101
        %p373 = pneg %p98
        %p374 = pneg %p127
        %p375 = pneg %p124
        %p376 = pneg %p153
        %p377 = pneg %p150
        %p378 = pneg %p181
        %p379 = pneg %p178
        %s380 = sand.u32 %s168, 1
        %s381 = scalar_lea.sflag [#allocation5], %s380
        %s382 = sand.u32 %s168, 1
        %s383 = smul.addr %s382, 256
        %s384 = scalar_lea.vmem [#allocation11], %s383
        %p385 = pneg %p209
        %p386 = pneg %p206
        %s387 = sand.u32 %s31, 1
        %s388 = scalar_lea.sflag [#allocation13], %s387
        %s389 = sand.u32 %s196, 1
        %s390 = smul.addr %s389, 8
        %s391 = scalar_lea.vmem [#allocation12], %s390
        %p392 = pneg %p237
        %p393 = pneg %p234
        %s394 = sand.u32 %s31, 1
        %s395 = scalar_lea.sflag [#allocation13], %s394
        %s396 = sand.u32 %s224, 1
        %s397 = smul.addr %s396, 8
        %s398 = scalar_lea.vmem [#allocation14], %s397
        %s399 = smul.u32 64, %s36
        %s400 = smul.u32 16, %s38
        %s401 = smul.u32 64, %s36
        %p403 = scmp.eq.s32.totalorder %s38, 0
        // Predicated region
        $region53: #{tpu_custom_call.1} parent=35 // pred_check
          %p404 = pneg %p403
        $region54: #{tpu_custom_call.1} parent=35 // pred_check_branch
          %406 = sbr.rel (%p404) target = $region56
        $region55: #{tpu_custom_call.1} parent=35 // pred_region
          %407 = vst [vmem:[#allocation2] sm:$0xff] 0.0
          %408 = vst [vmem:[#allocation2 + $0x8] sm:$0xff] 0.0
          %409 = vst [vmem:[#allocation2 + $0x10] sm:$0xff] 0.0
          %410 = vst [vmem:[#allocation2 + $0x18] sm:$0xff] 0.0
          %411 = vst [vmem:[#allocation2 + $0x20] sm:$0xff] 0.0
          %412 = vst [vmem:[#allocation2 + $0x28] sm:$0xff] 0.0
          %413 = vst [vmem:[#allocation2 + $0x30] sm:$0xff] 0.0
          %414 = vst [vmem:[#allocation2 + $0x38] sm:$0xff] 0.0
          %415 = vst [vmem:[#allocation2 + $0x40] sm:$0xff] 0.0
          %416 = vst [vmem:[#allocation2 + $0x48] sm:$0xff] 0.0
          %417 = vst [vmem:[#allocation2 + $0x50] sm:$0xff] 0.0
          %418 = vst [vmem:[#allocation2 + $0x58] sm:$0xff] 0.0
          %419 = vst [vmem:[#allocation2 + $0x60] sm:$0xff] 0.0
          %420 = vst [vmem:[#allocation2 + $0x68] sm:$0xff] 0.0
          %421 = vst [vmem:[#allocation2 + $0x70] sm:$0xff] 0.0
          %422 = vst [vmem:[#allocation2 + $0x78] sm:$0xff] 0.0
          %423 = vst [vmem:[#allocation2 + $0x80] sm:$0xff] 0.0
          %424 = vst [vmem:[#allocation2 + $0x88] sm:$0xff] 0.0
          %425 = vst [vmem:[#allocation2 + $0x90] sm:$0xff] 0.0
          %426 = vst [vmem:[#allocation2 + $0x98] sm:$0xff] 0.0
          %427 = vst [vmem:[#allocation2 + $0xa0] sm:$0xff] 0.0
          %428 = vst [vmem:[#allocation2 + $0xa8] sm:$0xff] 0.0
          %429 = vst [vmem:[#allocation2 + $0xb0] sm:$0xff] 0.0
          %430 = vst [vmem:[#allocation2 + $0xb8] sm:$0xff] 0.0
          %431 = vst [vmem:[#allocation2 + $0xc0] sm:$0xff] 0.0
          %432 = vst [vmem:[#allocation2 + $0xc8] sm:$0xff] 0.0
          %433 = vst [vmem:[#allocation2 + $0xd0] sm:$0xff] 0.0
          %434 = vst [vmem:[#allocation2 + $0xd8] sm:$0xff] 0.0
          %435 = vst [vmem:[#allocation2 + $0xe0] sm:$0xff] 0.0
          %436 = vst [vmem:[#allocation2 + $0xe8] sm:$0xff] 0.0
          %437 = vst [vmem:[#allocation2 + $0xf0] sm:$0xff] 0.0
          %438 = vst [vmem:[#allocation2 + $0xf8] sm:$0xff] 0.0
          %439 = vst [vmem:[#allocation2 + $0x100] sm:$0xff] 0.0
          %440 = vst [vmem:[#allocation2 + $0x108] sm:$0xff] 0.0
          %441 = vst [vmem:[#allocation2 + $0x110] sm:$0xff] 0.0
          %442 = vst [vmem:[#allocation2 + $0x118] sm:$0xff] 0.0
          %443 = vst [vmem:[#allocation2 + $0x120] sm:$0xff] 0.0
          %444 = vst [vmem:[#allocation2 + $0x128] sm:$0xff] 0.0
          %445 = vst [vmem:[#allocation2 + $0x130] sm:$0xff] 0.0
          %446 = vst [vmem:[#allocation2 + $0x138] sm:$0xff] 0.0
          %447 = vst [vmem:[#allocation2 + $0x140] sm:$0xff] 0.0
          %448 = vst [vmem:[#allocation2 + $0x148] sm:$0xff] 0.0
          %449 = vst [vmem:[#allocation2 + $0x150] sm:$0xff] 0.0
          %450 = vst [vmem:[#allocation2 + $0x158] sm:$0xff] 0.0
          %451 = vst [vmem:[#allocation2 + $0x160] sm:$0xff] 0.0
          %452 = vst [vmem:[#allocation2 + $0x168] sm:$0xff] 0.0
          %453 = vst [vmem:[#allocation2 + $0x170] sm:$0xff] 0.0
          %454 = vst [vmem:[#allocation2 + $0x178] sm:$0xff] 0.0
          %455 = vst [vmem:[#allocation2 + $0x180] sm:$0xff] 0.0
          %456 = vst [vmem:[#allocation2 + $0x188] sm:$0xff] 0.0
          %457 = vst [vmem:[#allocation2 + $0x190] sm:$0xff] 0.0
          %458 = vst [vmem:[#allocation2 + $0x198] sm:$0xff] 0.0
          %459 = vst [vmem:[#allocation2 + $0x1a0] sm:$0xff] 0.0
          %460 = vst [vmem:[#allocation2 + $0x1a8] sm:$0xff] 0.0
          %461 = vst [vmem:[#allocation2 + $0x1b0] sm:$0xff] 0.0
          %462 = vst [vmem:[#allocation2 + $0x1b8] sm:$0xff] 0.0
          %463 = vst [vmem:[#allocation2 + $0x1c0] sm:$0xff] 0.0
          %464 = vst [vmem:[#allocation2 + $0x1c8] sm:$0xff] 0.0
          %465 = vst [vmem:[#allocation2 + $0x1d0] sm:$0xff] 0.0
          %466 = vst [vmem:[#allocation2 + $0x1d8] sm:$0xff] 0.0
          %467 = vst [vmem:[#allocation2 + $0x1e0] sm:$0xff] 0.0
          %468 = vst [vmem:[#allocation2 + $0x1e8] sm:$0xff] 0.0
          %469 = vst [vmem:[#allocation2 + $0x1f0] sm:$0xff] 0.0
          %470 = vst [vmem:[#allocation2 + $0x1f8] sm:$0xff] 0.0
        $region56: #{tpu_custom_call.1} parent=35 // pred_fallthru
          _
        %v471 = vld [vmem:[%s338] sm:$0xf]
        %v472 = vld [vmem:[%s338 + $0x4] sm:$0xf]
        %v473 = vld [vmem:[%s338 + $0x8] sm:$0xf]
        %v474 = vld [vmem:[%s338 + $0xc] sm:$0xf]
        %v475 = vld [vmem:[%s338 + $0x10] sm:$0xf]
        %v476 = vld [vmem:[%s338 + $0x14] sm:$0xf]
        %v477 = vld [vmem:[%s338 + $0x18] sm:$0xf]
        %v478 = vld [vmem:[%s338 + $0x1c] sm:$0xf]
        %v479 = vld [vmem:[%s338 + $0x20] sm:$0xf]
        %v480 = vld [vmem:[%s338 + $0x24] sm:$0xf]
        %v481 = vld [vmem:[%s338 + $0x28] sm:$0xf]
        %v482 = vld [vmem:[%s338 + $0x2c] sm:$0xf]
        %v483 = vld [vmem:[%s338 + $0x30] sm:$0xf]
        %v484 = vld [vmem:[%s338 + $0x34] sm:$0xf]
        %v485 = vld [vmem:[%s338 + $0x38] sm:$0xf]
        %v486 = vld [vmem:[%s338 + $0x3c] sm:$0xf]
        %v487 = vld [vmem:[%s338 + $0x40] sm:$0xf]
        %v488 = vld [vmem:[%s338 + $0x44] sm:$0xf]
        %v489 = vld [vmem:[%s338 + $0x48] sm:$0xf]
        %v490 = vld [vmem:[%s338 + $0x4c] sm:$0xf]
        %v491 = vld [vmem:[%s338 + $0x50] sm:$0xf]
        %v492 = vld [vmem:[%s338 + $0x54] sm:$0xf]
        %v493 = vld [vmem:[%s338 + $0x58] sm:$0xf]
        %v494 = vld [vmem:[%s338 + $0x5c] sm:$0xf]
        %v495 = vld [vmem:[%s338 + $0x60] sm:$0xf]
        %v496 = vld [vmem:[%s338 + $0x64] sm:$0xf]
        %v497 = vld [vmem:[%s338 + $0x68] sm:$0xf]
        %v498 = vld [vmem:[%s338 + $0x6c] sm:$0xf]
        %v499 = vld [vmem:[%s338 + $0x70] sm:$0xf]
        %v500 = vld [vmem:[%s338 + $0x74] sm:$0xf]
        %v501 = vld [vmem:[%s338 + $0x78] sm:$0xf]
        %v502 = vld [vmem:[%s338 + $0x7c] sm:$0xf]
        %v503 = vld [vmem:[%s338 + $0x80] sm:$0xf]
        %v504 = vld [vmem:[%s338 + $0x84] sm:$0xf]
        %v505 = vld [vmem:[%s338 + $0x88] sm:$0xf]
        %v506 = vld [vmem:[%s338 + $0x8c] sm:$0xf]
        %v507 = vld [vmem:[%s338 + $0x90] sm:$0xf]
        %v508 = vld [vmem:[%s338 + $0x94] sm:$0xf]
        %v509 = vld [vmem:[%s338 + $0x98] sm:$0xf]
        %v510 = vld [vmem:[%s338 + $0x9c] sm:$0xf]
        %v511 = vld [vmem:[%s338 + $0xa0] sm:$0xf]
        %v512 = vld [vmem:[%s338 + $0xa4] sm:$0xf]
        %v513 = vld [vmem:[%s338 + $0xa8] sm:$0xf]
        %v514 = vld [vmem:[%s338 + $0xac] sm:$0xf]
        %v515 = vld [vmem:[%s338 + $0xb0] sm:$0xf]
        %v516 = vld [vmem:[%s338 + $0xb4] sm:$0xf]
        %v517 = vld [vmem:[%s338 + $0xb8] sm:$0xf]
        %v518 = vld [vmem:[%s338 + $0xbc] sm:$0xf]
        %v519 = vld [vmem:[%s338 + $0xc0] sm:$0xf]
        %v520 = vld [vmem:[%s338 + $0xc4] sm:$0xf]
        %v521 = vld [vmem:[%s338 + $0xc8] sm:$0xf]
        %v522 = vld [vmem:[%s338 + $0xcc] sm:$0xf]
        %v523 = vld [vmem:[%s338 + $0xd0] sm:$0xf]
        %v524 = vld [vmem:[%s338 + $0xd4] sm:$0xf]
        %v525 = vld [vmem:[%s338 + $0xd8] sm:$0xf]
        %v526 = vld [vmem:[%s338 + $0xdc] sm:$0xf]
        %v527 = vld [vmem:[%s338 + $0xe0] sm:$0xf]
        %v528 = vld [vmem:[%s338 + $0xe4] sm:$0xf]
        %v529 = vld [vmem:[%s338 + $0xe8] sm:$0xf]
        %v530 = vld [vmem:[%s338 + $0xec] sm:$0xf]
        %v531 = vld [vmem:[%s338 + $0xf0] sm:$0xf]
        %v532 = vld [vmem:[%s338 + $0xf4] sm:$0xf]
        %v533 = vld [vmem:[%s338 + $0xf8] sm:$0xf]
        %v534 = vld [vmem:[%s338 + $0xfc] sm:$0xf]
        %v535 = vld [vmem:[#allocation2] sm:$0xff]
        %v536 = vld [vmem:[#allocation2 + $0x8] sm:$0xff]
        %v537 = vld [vmem:[#allocation2 + $0x10] sm:$0xff]
        %v538 = vld [vmem:[#allocation2 + $0x18] sm:$0xff]
        %v539 = vld [vmem:[#allocation2 + $0x20] sm:$0xff]
        %v540 = vld [vmem:[#allocation2 + $0x28] sm:$0xff]
        %v541 = vld [vmem:[#allocation2 + $0x30] sm:$0xff]
        %v542 = vld [vmem:[#allocation2 + $0x38] sm:$0xff]
        %v543 = vld [vmem:[#allocation2 + $0x40] sm:$0xff]
        %v544 = vld [vmem:[#allocation2 + $0x48] sm:$0xff]
        %v545 = vld [vmem:[#allocation2 + $0x50] sm:$0xff]
        %v546 = vld [vmem:[#allocation2 + $0x58] sm:$0xff]
        %v547 = vld [vmem:[#allocation2 + $0x60] sm:$0xff]
        %v548 = vld [vmem:[#allocation2 + $0x68] sm:$0xff]
        %v549 = vld [vmem:[#allocation2 + $0x70] sm:$0xff]
        %v550 = vld [vmem:[#allocation2 + $0x78] sm:$0xff]
        %v551 = vld [vmem:[#allocation2 + $0x80] sm:$0xff]
        %v552 = vld [vmem:[#allocation2 + $0x88] sm:$0xff]
        %v553 = vld [vmem:[#allocation2 + $0x90] sm:$0xff]
        %v554 = vld [vmem:[#allocation2 + $0x98] sm:$0xff]
        %v555 = vld [vmem:[#allocation2 + $0xa0] sm:$0xff]
        %v556 = vld [vmem:[#allocation2 + $0xa8] sm:$0xff]
        %v557 = vld [vmem:[#allocation2 + $0xb0] sm:$0xff]
        %v558 = vld [vmem:[#allocation2 + $0xb8] sm:$0xff]
        %v559 = vld [vmem:[#allocation2 + $0xc0] sm:$0xff]
        %v560 = vld [vmem:[#allocation2 + $0xc8] sm:$0xff]
        %v561 = vld [vmem:[#allocation2 + $0xd0] sm:$0xff]
        %v562 = vld [vmem:[#allocation2 + $0xd8] sm:$0xff]
        %v563 = vld [vmem:[#allocation2 + $0xe0] sm:$0xff]
        %v564 = vld [vmem:[#allocation2 + $0xe8] sm:$0xff]
        %v565 = vld [vmem:[#allocation2 + $0xf0] sm:$0xff]
        %v566 = vld [vmem:[#allocation2 + $0xf8] sm:$0xff]
        %v567 = vld [vmem:[#allocation2 + $0x100] sm:$0xff]
        %v568 = vld [vmem:[#allocation2 + $0x108] sm:$0xff]
        %v569 = vld [vmem:[#allocation2 + $0x110] sm:$0xff]
        %v570 = vld [vmem:[#allocation2 + $0x118] sm:$0xff]
        %v571 = vld [vmem:[#allocation2 + $0x120] sm:$0xff]
        %v572 = vld [vmem:[#allocation2 + $0x128] sm:$0xff]
        %v573 = vld [vmem:[#allocation2 + $0x130] sm:$0xff]
        %v574 = vld [vmem:[#allocation2 + $0x138] sm:$0xff]
        %v575 = vld [vmem:[#allocation2 + $0x140] sm:$0xff]
        %v576 = vld [vmem:[#allocation2 + $0x148] sm:$0xff]
        %v577 = vld [vmem:[#allocation2 + $0x150] sm:$0xff]
        %v578 = vld [vmem:[#allocation2 + $0x158] sm:$0xff]
        %v579 = vld [vmem:[#allocation2 + $0x160] sm:$0xff]
        %v580 = vld [vmem:[#allocation2 + $0x168] sm:$0xff]
        %v581 = vld [vmem:[#allocation2 + $0x170] sm:$0xff]
        %v582 = vld [vmem:[#allocation2 + $0x178] sm:$0xff]
        %v583 = vld [vmem:[#allocation2 + $0x180] sm:$0xff]
        %v584 = vld [vmem:[#allocation2 + $0x188] sm:$0xff]
        %v585 = vld [vmem:[#allocation2 + $0x190] sm:$0xff]
        %v586 = vld [vmem:[#allocation2 + $0x198] sm:$0xff]
        %v587 = vld [vmem:[#allocation2 + $0x1a0] sm:$0xff]
        %v588 = vld [vmem:[#allocation2 + $0x1a8] sm:$0xff]
        %v589 = vld [vmem:[#allocation2 + $0x1b0] sm:$0xff]
        %v590 = vld [vmem:[#allocation2 + $0x1b8] sm:$0xff]
        %v591 = vld [vmem:[#allocation2 + $0x1c0] sm:$0xff]
        %v592 = vld [vmem:[#allocation2 + $0x1c8] sm:$0xff]
        %v593 = vld [vmem:[#allocation2 + $0x1d0] sm:$0xff]
        %v594 = vld [vmem:[#allocation2 + $0x1d8] sm:$0xff]
        %v595 = vld [vmem:[#allocation2 + $0x1e0] sm:$0xff]
        %v596 = vld [vmem:[#allocation2 + $0x1e8] sm:$0xff]
        %v597 = vld [vmem:[#allocation2 + $0x1f0] sm:$0xff]
        %v598 = vld [vmem:[#allocation2 + $0x1f8] sm:$0xff]
        %v599 = vld [vmem:[%s347] sm:$0xf]
        %v600 = vld [vmem:[%s347 + $0x4] sm:$0xf]
        %v601 = vld [vmem:[%s347 + $0x8] sm:$0xf]
        %v602 = vld [vmem:[%s347 + $0xc] sm:$0xf]
        %v603 = vld [vmem:[%s347 + $0x10] sm:$0xf]
        %v604 = vld [vmem:[%s347 + $0x14] sm:$0xf]
        %v605 = vld [vmem:[%s347 + $0x18] sm:$0xf]
        %v606 = vld [vmem:[%s347 + $0x1c] sm:$0xf]
        %v607 = vld [vmem:[%s347 + $0x20] sm:$0xf]
        %v608 = vld [vmem:[%s347 + $0x24] sm:$0xf]
        %v609 = vld [vmem:[%s347 + $0x28] sm:$0xf]
        %v610 = vld [vmem:[%s347 + $0x2c] sm:$0xf]
        %v611 = vld [vmem:[%s347 + $0x30] sm:$0xf]
        %v612 = vld [vmem:[%s347 + $0x34] sm:$0xf]
        %v613 = vld [vmem:[%s347 + $0x38] sm:$0xf]
        %v614 = vld [vmem:[%s347 + $0x3c] sm:$0xf]
        %v679 = vunpack.c.l.b16 %v471
        %v680 = vunpack.c.l.b16 %v472
        %v681 = vunpack.c.l.b16 %v473
        %v682 = vunpack.c.l.b16 %v474
        %v683 = vunpack.c.l.b16 %v475
        %v684 = vunpack.c.l.b16 %v476
        %v685 = vunpack.c.l.b16 %v477
        %v686 = vunpack.c.l.b16 %v478
        %v687 = vunpack.c.l.b16 %v479
        %v688 = vunpack.c.l.b16 %v480
        %v689 = vunpack.c.l.b16 %v481
        %v690 = vunpack.c.l.b16 %v482
        %v691 = vunpack.c.l.b16 %v483
        %v692 = vunpack.c.l.b16 %v484
        %v693 = vunpack.c.l.b16 %v485
        %v694 = vunpack.c.l.b16 %v486
        %v695 = vunpack.c.l.b16 %v487
        %v696 = vunpack.c.l.b16 %v488
        %v697 = vunpack.c.l.b16 %v489
        %v698 = vunpack.c.l.b16 %v490
        %v699 = vunpack.c.l.b16 %v491
        %v700 = vunpack.c.l.b16 %v492
        %v701 = vunpack.c.l.b16 %v493
        %v702 = vunpack.c.l.b16 %v494
        %v703 = vunpack.c.l.b16 %v495
        %v704 = vunpack.c.l.b16 %v496
        %v705 = vunpack.c.l.b16 %v497
        %v706 = vunpack.c.l.b16 %v498
        %v707 = vunpack.c.l.b16 %v499
        %v708 = vunpack.c.l.b16 %v500
        %v709 = vunpack.c.l.b16 %v501
        %v710 = vunpack.c.l.b16 %v502
        %v711 = vunpack.c.l.b16 %v503
        %v712 = vunpack.c.l.b16 %v504
        %v713 = vunpack.c.l.b16 %v505
        %v714 = vunpack.c.l.b16 %v506
        %v715 = vunpack.c.l.b16 %v507
        %v716 = vunpack.c.l.b16 %v508
        %v717 = vunpack.c.l.b16 %v509
        %v718 = vunpack.c.l.b16 %v510
        %v719 = vunpack.c.l.b16 %v511
        %v720 = vunpack.c.l.b16 %v512
        %v721 = vunpack.c.l.b16 %v513
        %v722 = vunpack.c.l.b16 %v514
        %v723 = vunpack.c.l.b16 %v515
        %v724 = vunpack.c.l.b16 %v516
        %v725 = vunpack.c.l.b16 %v517
        %v726 = vunpack.c.l.b16 %v518
        %v727 = vunpack.c.l.b16 %v519
        %v728 = vunpack.c.l.b16 %v520
        %v729 = vunpack.c.l.b16 %v521
        %v730 = vunpack.c.l.b16 %v522
        %v731 = vunpack.c.l.b16 %v523
        %v732 = vunpack.c.l.b16 %v524
        %v733 = vunpack.c.l.b16 %v525
        %v734 = vunpack.c.l.b16 %v526
        %v735 = vunpack.c.l.b16 %v527
        %v736 = vunpack.c.l.b16 %v528
        %v737 = vunpack.c.l.b16 %v529
        %v738 = vunpack.c.l.b16 %v530
        %v739 = vunpack.c.l.b16 %v531
        %v740 = vunpack.c.l.b16 %v532
        %v741 = vunpack.c.l.b16 %v533
        %v742 = vunpack.c.l.b16 %v534
        %v743 = vpack.c.b16 %v680, %v679
        %v744 = vpack.c.b16 %v682, %v681
        %v745 = vpack.c.b16 %v684, %v683
        %v746 = vpack.c.b16 %v686, %v685
        %v747 = vpack.c.b16 %v688, %v687
        %v748 = vpack.c.b16 %v690, %v689
        %v749 = vpack.c.b16 %v692, %v691
        %v750 = vpack.c.b16 %v694, %v693
        %v751 = vpack.c.b16 %v696, %v695
        %v752 = vpack.c.b16 %v698, %v697
        %v753 = vpack.c.b16 %v700, %v699
        %v754 = vpack.c.b16 %v702, %v701
        %v755 = vpack.c.b16 %v704, %v703
        %v756 = vpack.c.b16 %v706, %v705
        %v757 = vpack.c.b16 %v708, %v707
        %v758 = vpack.c.b16 %v710, %v709
        %v759 = vpack.c.b16 %v712, %v711
        %v760 = vpack.c.b16 %v714, %v713
        %v761 = vpack.c.b16 %v716, %v715
        %v762 = vpack.c.b16 %v718, %v717
        %v763 = vpack.c.b16 %v720, %v719
        %v764 = vpack.c.b16 %v722, %v721
        %v765 = vpack.c.b16 %v724, %v723
        %v766 = vpack.c.b16 %v726, %v725
        %v767 = vpack.c.b16 %v728, %v727
        %v768 = vpack.c.b16 %v730, %v729
        %v769 = vpack.c.b16 %v732, %v731
        %v770 = vpack.c.b16 %v734, %v733
        %v771 = vpack.c.b16 %v736, %v735
        %v772 = vpack.c.b16 %v738, %v737
        %v773 = vpack.c.b16 %v740, %v739
        %v774 = vpack.c.b16 %v742, %v741
        %v823 = vunpack.c.l.b16 %v599
        %v824 = vunpack.c.l.b16 %v600
        %v825 = vunpack.c.l.b16 %v601
        %v826 = vunpack.c.l.b16 %v602
        %v827 = vunpack.c.l.b16 %v603
        %v828 = vunpack.c.l.b16 %v604
        %v829 = vunpack.c.l.b16 %v605
        %v830 = vunpack.c.l.b16 %v606
        %v831 = vunpack.c.l.b16 %v607
        %v832 = vunpack.c.l.b16 %v608
        %v833 = vunpack.c.l.b16 %v609
        %v834 = vunpack.c.l.b16 %v610
        %v835 = vunpack.c.l.b16 %v611
        %v836 = vunpack.c.l.b16 %v612
        %v837 = vunpack.c.l.b16 %v613
        %v838 = vunpack.c.l.b16 %v614
        %v839 = vpack.c.b16 %v824, %v823
        %v840 = vpack.c.b16 %v826, %v825
        %v841 = vpack.c.b16 %v828, %v827
        %v842 = vpack.c.b16 %v830, %v829
        %v843 = vpack.c.b16 %v832, %v831
        %v844 = vpack.c.b16 %v834, %v833
        %v845 = vpack.c.b16 %v836, %v835
        %v846 = vpack.c.b16 %v838, %v837
        %855 = vmatprep.subr.bf16.mxu0 0
        %856 = vmatpush1.bf16.msra.mxu0 %v839
        %857 = vmatprep.subr.bf16.mxu0 0
        %858 = vmatpush1.bf16.msra.mxu0 %v840
        %859 = vmatprep.subr.bf16.mxu0 0
        %860 = vmatpush1.bf16.msra.mxu0 %v841
        %861 = vmatprep.subr.bf16.mxu0 0
        %862 = vmatpush1.bf16.msra.mxu0 %v842
        %863 = vmatprep.subr.bf16.mxu0 0
        %864 = vmatpush1.bf16.msra.mxu0 %v843
        %865 = vmatprep.subr.bf16.mxu0 0
        %866 = vmatpush1.bf16.msra.mxu0 %v844
        %867 = vmatprep.subr.bf16.mxu0 0
        %868 = vmatpush1.bf16.msra.mxu0 %v845
        %869 = vmatprep.subr.bf16.mxu0 0
        %870 = vmatpush1.bf16.msra.mxu0 %v846
        %871 = vmatprep.subr.bf16.mxu0 0
        %872 = vmatpush1.bf16.msra.mxu0 0
        %873 = vmatprep.subr.bf16.mxu0 0
        %874 = vmatpush1.bf16.msra.mxu0 0
        %875 = vmatprep.subr.bf16.mxu0 0
        %876 = vmatpush1.bf16.msra.mxu0 0
        %877 = vmatprep.subr.bf16.mxu0 0
        %878 = vmatpush1.bf16.msra.mxu0 0
        %879 = vmatprep.subr.bf16.mxu0 0
        %880 = vmatpush1.bf16.msra.mxu0 0
        %881 = vmatprep.subr.bf16.mxu0 0
        %882 = vmatpush1.bf16.msra.mxu0 0
        %883 = vmatprep.subr.bf16.mxu0 0
        %884 = vmatpush1.bf16.msra.mxu0 0
        %885 = vmatprep.subr.bf16.mxu0 0
        %886 = vmatpush1.bf16.msra.mxu0 0
        %887 = vmatprep.mubr.bf16.mxu0 0
        %888 = vmatmul.mubr.bf16.gmra.mrb[0].mxu0 %v743
        %v889 = vpop.f32.mrb[0].mxu0
        %v890 = vadd.f32 0.0, %v889
        %v891 = vpop.f32.mrb[0].mxu0
        %v892 = vpop.f32.mrb[0].mxu0
        %v893 = vadd.f32 0.0, %v892
        %v894 = vpop.f32.mrb[0].mxu0
        %895 = vmatprep.mubr.bf16.mxu0 0
        %896 = vmatmul.mubr.bf16.gmra.mrb[0].mxu0 %v744
        %v897 = vpop.f32.mrb[0].mxu0
        %v898 = vadd.f32 0.0, %v897
        %v899 = vpop.f32.mrb[0].mxu0
        %v900 = vpop.f32.mrb[0].mxu0
        %v901 = vadd.f32 0.0, %v900
        %v902 = vpop.f32.mrb[0].mxu0
        %903 = vmatprep.mubr.bf16.mxu0 0
        %904 = vmatmul.mubr.bf16.gmra.mrb[0].mxu0 %v745
        %v905 = vpop.f32.mrb[0].mxu0
        %v906 = vadd.f32 0.0, %v905
        %v907 = vpop.f32.mrb[0].mxu0
        %v908 = vpop.f32.mrb[0].mxu0
        %v909 = vadd.f32 0.0, %v908
        %v910 = vpop.f32.mrb[0].mxu0
        %911 = vmatprep.mubr.bf16.mxu0 0
        %912 = vmatmul.mubr.bf16.gmra.mrb[0].mxu0 %v746
        %v913 = vpop.f32.mrb[0].mxu0
        %v914 = vadd.f32 0.0, %v913
        %v915 = vpop.f32.mrb[0].mxu0
        %v916 = vpop.f32.mrb[0].mxu0
        %v917 = vadd.f32 0.0, %v916
        %v918 = vpop.f32.mrb[0].mxu0
        %919 = vmatprep.mubr.bf16.mxu0 0
        %920 = vmatmul.mubr.bf16.gmra.mrb[0].mxu0 %v747
        %v921 = vpop.f32.mrb[0].mxu0
        %v922 = vadd.f32 0.0, %v921
        %v923 = vpop.f32.mrb[0].mxu0
        %v924 = vpop.f32.mrb[0].mxu0
        %v925 = vadd.f32 0.0, %v924
        %v926 = vpop.f32.mrb[0].mxu0
        %927 = vmatprep.mubr.bf16.mxu0 0
        %928 = vmatmul.mubr.bf16.gmra.mrb[0].mxu0 %v748
        %v929 = vpop.f32.mrb[0].mxu0
        %v930 = vadd.f32 0.0, %v929
        %v931 = vpop.f32.mrb[0].mxu0
        %v932 = vpop.f32.mrb[0].mxu0
        %v933 = vadd.f32 0.0, %v932
        %v934 = vpop.f32.mrb[0].mxu0
        %935 = vmatprep.mubr.bf16.mxu0 0
        %936 = vmatmul.mubr.bf16.gmra.mrb[0].mxu0 %v749
        %v937 = vpop.f32.mrb[0].mxu0
        %v938 = vadd.f32 0.0, %v937
        %v939 = vpop.f32.mrb[0].mxu0
        %v940 = vpop.f32.mrb[0].mxu0
        %v941 = vadd.f32 0.0, %v940
        %v942 = vpop.f32.mrb[0].mxu0
        %943 = vmatprep.mubr.bf16.mxu0 0
        %944 = vmatmul.mubr.bf16.gmra.mrb[0].mxu0 %v750
        %v945 = vpop.f32.mrb[0].mxu0
        %v946 = vadd.f32 0.0, %v945
        %v947 = vpop.f32.mrb[0].mxu0
        %v948 = vpop.f32.mrb[0].mxu0
        %v949 = vadd.f32 0.0, %v948
        %v950 = vpop.f32.mrb[0].mxu0
        %951 = vmatprep.mubr.bf16.mxu0 0
        %952 = vmatmul.mubr.bf16.gmra.mrb[0].mxu0 %v751
        %v953 = vpop.f32.mrb[0].mxu0
        %v954 = vadd.f32 0.0, %v953
        %v955 = vpop.f32.mrb[0].mxu0
        %v956 = vpop.f32.mrb[0].mxu0
        %v957 = vadd.f32 0.0, %v956
        %v958 = vpop.f32.mrb[0].mxu0
        %959 = vmatprep.mubr.bf16.mxu0 0
        %960 = vmatmul.mubr.bf16.gmra.mrb[0].mxu0 %v752
        %v961 = vpop.f32.mrb[0].mxu0
        %v962 = vadd.f32 0.0, %v961
        %v963 = vpop.f32.mrb[0].mxu0
        %v964 = vpop.f32.mrb[0].mxu0
        %v965 = vadd.f32 0.0, %v964
        %v966 = vpop.f32.mrb[0].mxu0
        %967 = vmatprep.mubr.bf16.mxu0 0
        %968 = vmatmul.mubr.bf16.gmra.mrb[0].mxu0 %v753
        %v969 = vpop.f32.mrb[0].mxu0
        %v970 = vadd.f32 0.0, %v969
        %v971 = vpop.f32.mrb[0].mxu0
        %v972 = vpop.f32.mrb[0].mxu0
        %v973 = vadd.f32 0.0, %v972
        %v974 = vpop.f32.mrb[0].mxu0
        %975 = vmatprep.mubr.bf16.mxu0 0
        %976 = vmatmul.mubr.bf16.gmra.mrb[0].mxu0 %v754
        %v977 = vpop.f32.mrb[0].mxu0
        %v978 = vadd.f32 0.0, %v977
        %v979 = vpop.f32.mrb[0].mxu0
        %v980 = vpop.f32.mrb[0].mxu0
        %v981 = vadd.f32 0.0, %v980
        %v982 = vpop.f32.mrb[0].mxu0
        %983 = vmatprep.mubr.bf16.mxu0 0
        %984 = vmatmul.mubr.bf16.gmra.mrb[0].mxu0 %v755
        %v985 = vpop.f32.mrb[0].mxu0
        %v986 = vadd.f32 0.0, %v985
        %v987 = vpop.f32.mrb[0].mxu0
        %v988 = vpop.f32.mrb[0].mxu0
        %v989 = vadd.f32 0.0, %v988
        %v990 = vpop.f32.mrb[0].mxu0
        %991 = vmatprep.mubr.bf16.mxu0 0
        %992 = vmatmul.mubr.bf16.gmra.mrb[0].mxu0 %v756
        %v993 = vpop.f32.mrb[0].mxu0
        %v994 = vadd.f32 0.0, %v993
        %v995 = vpop.f32.mrb[0].mxu0
        %v996 = vpop.f32.mrb[0].mxu0
        %v997 = vadd.f32 0.0, %v996
        %v998 = vpop.f32.mrb[0].mxu0
        %999 = vmatprep.mubr.bf16.mxu0 0
        %1000 = vmatmul.mubr.bf16.gmra.mrb[0].mxu0 %v757
        %v1001 = vpop.f32.mrb[0].mxu0
        %v1002 = vadd.f32 0.0, %v1001
        %v1003 = vpop.f32.mrb[0].mxu0
        %v1004 = vpop.f32.mrb[0].mxu0
        %v1005 = vadd.f32 0.0, %v1004
        %v1006 = vpop.f32.mrb[0].mxu0
        %1007 = vmatprep.mubr.bf16.mxu0 0
        %1008 = vmatmul.mubr.bf16.gmra.mrb[0].mxu0 %v758
        %v1009 = vpop.f32.mrb[0].mxu0
        %v1010 = vadd.f32 0.0, %v1009
        %v1011 = vpop.f32.mrb[0].mxu0
        %v1012 = vpop.f32.mrb[0].mxu0
        %v1013 = vadd.f32 0.0, %v1012
        %v1014 = vpop.f32.mrb[0].mxu0
        %1015 = vmatprep.mubr.bf16.mxu0 0
        %1016 = vmatmul.mubr.bf16.gmra.mrb[0].mxu0 %v759
        %v1017 = vpop.f32.mrb[0].mxu0
        %v1018 = vadd.f32 0.0, %v1017
        %v1019 = vpop.f32.mrb[0].mxu0
        %v1020 = vpop.f32.mrb[0].mxu0
        %v1021 = vadd.f32 0.0, %v1020
        %v1022 = vpop.f32.mrb[0].mxu0
        %1023 = vmatprep.mubr.bf16.mxu0 0
        %1024 = vmatmul.mubr.bf16.gmra.mrb[0].mxu0 %v760
        %v1025 = vpop.f32.mrb[0].mxu0
        %v1026 = vadd.f32 0.0, %v1025
        %v1027 = vpop.f32.mrb[0].mxu0
        %v1028 = vpop.f32.mrb[0].mxu0
        %v1029 = vadd.f32 0.0, %v1028
        %v1030 = vpop.f32.mrb[0].mxu0
        %1031 = vmatprep.mubr.bf16.mxu0 0
        %1032 = vmatmul.mubr.bf16.gmra.mrb[0].mxu0 %v761
        %v1033 = vpop.f32.mrb[0].mxu0
        %v1034 = vadd.f32 0.0, %v1033
        %v1035 = vpop.f32.mrb[0].mxu0
        %v1036 = vpop.f32.mrb[0].mxu0
        %v1037 = vadd.f32 0.0, %v1036
        %v1038 = vpop.f32.mrb[0].mxu0
        %1039 = vmatprep.mubr.bf16.mxu0 0
        %1040 = vmatmul.mubr.bf16.gmra.mrb[0].mxu0 %v762
        %v1041 = vpop.f32.mrb[0].mxu0
        %v1042 = vadd.f32 0.0, %v1041
        %v1043 = vpop.f32.mrb[0].mxu0
        %v1044 = vpop.f32.mrb[0].mxu0
        %v1045 = vadd.f32 0.0, %v1044
        %v1046 = vpop.f32.mrb[0].mxu0
        %1047 = vmatprep.mubr.bf16.mxu0 0
        %1048 = vmatmul.mubr.bf16.gmra.mrb[0].mxu0 %v763
        %v1049 = vpop.f32.mrb[0].mxu0
        %v1050 = vadd.f32 0.0, %v1049
        %v1051 = vpop.f32.mrb[0].mxu0
        %v1052 = vpop.f32.mrb[0].mxu0
        %v1053 = vadd.f32 0.0, %v1052
        %v1054 = vpop.f32.mrb[0].mxu0
        %1055 = vmatprep.mubr.bf16.mxu0 0
        %1056 = vmatmul.mubr.bf16.gmra.mrb[0].mxu0 %v764
        %v1057 = vpop.f32.mrb[0].mxu0
        %v1058 = vadd.f32 0.0, %v1057
        %v1059 = vpop.f32.mrb[0].mxu0
        %v1060 = vpop.f32.mrb[0].mxu0
        %v1061 = vadd.f32 0.0, %v1060
        %v1062 = vpop.f32.mrb[0].mxu0
        %1063 = vmatprep.mubr.bf16.mxu0 0
        %1064 = vmatmul.mubr.bf16.gmra.mrb[0].mxu0 %v765
        %v1065 = vpop.f32.mrb[0].mxu0
        %v1066 = vadd.f32 0.0, %v1065
        %v1067 = vpop.f32.mrb[0].mxu0
        %v1068 = vpop.f32.mrb[0].mxu0
        %v1069 = vadd.f32 0.0, %v1068
        %v1070 = vpop.f32.mrb[0].mxu0
        %1071 = vmatprep.mubr.bf16.mxu0 0
        %1072 = vmatmul.mubr.bf16.gmra.mrb[0].mxu0 %v766
        %v1073 = vpop.f32.mrb[0].mxu0
        %v1074 = vadd.f32 0.0, %v1073
        %v1075 = vpop.f32.mrb[0].mxu0
        %v1076 = vpop.f32.mrb[0].mxu0
        %v1077 = vadd.f32 0.0, %v1076
        %v1078 = vpop.f32.mrb[0].mxu0
        %1079 = vmatprep.mubr.bf16.mxu0 0
        %1080 = vmatmul.mubr.bf16.gmra.mrb[0].mxu0 %v767
        %v1081 = vpop.f32.mrb[0].mxu0
        %v1082 = vadd.f32 0.0, %v1081
        %v1083 = vpop.f32.mrb[0].mxu0
        %v1084 = vpop.f32.mrb[0].mxu0
        %v1085 = vadd.f32 0.0, %v1084
        %v1086 = vpop.f32.mrb[0].mxu0
        %1087 = vmatprep.mubr.bf16.mxu0 0
        %1088 = vmatmul.mubr.bf16.gmra.mrb[0].mxu0 %v768
        %v1089 = vpop.f32.mrb[0].mxu0
        %v1090 = vadd.f32 0.0, %v1089
        %v1091 = vpop.f32.mrb[0].mxu0
        %v1092 = vpop.f32.mrb[0].mxu0
        %v1093 = vadd.f32 0.0, %v1092
        %v1094 = vpop.f32.mrb[0].mxu0
        %1095 = vmatprep.mubr.bf16.mxu0 0
        %1096 = vmatmul.mubr.bf16.gmra.mrb[0].mxu0 %v769
        %v1097 = vpop.f32.mrb[0].mxu0
        %v1098 = vadd.f32 0.0, %v1097
        %v1099 = vpop.f32.mrb[0].mxu0
        %v1100 = vpop.f32.mrb[0].mxu0
        %v1101 = vadd.f32 0.0, %v1100
        %v1102 = vpop.f32.mrb[0].mxu0
        %1103 = vmatprep.mubr.bf16.mxu0 0
        %1104 = vmatmul.mubr.bf16.gmra.mrb[0].mxu0 %v770
        %v1105 = vpop.f32.mrb[0].mxu0
        %v1106 = vadd.f32 0.0, %v1105
        %v1107 = vpop.f32.mrb[0].mxu0
        %v1108 = vpop.f32.mrb[0].mxu0
        %v1109 = vadd.f32 0.0, %v1108
        %v1110 = vpop.f32.mrb[0].mxu0
        %1111 = vmatprep.mubr.bf16.mxu0 0
        %1112 = vmatmul.mubr.bf16.gmra.mrb[0].mxu0 %v771
        %v1113 = vpop.f32.mrb[0].mxu0
        %v1114 = vadd.f32 0.0, %v1113
        %v1115 = vpop.f32.mrb[0].mxu0
        %v1116 = vpop.f32.mrb[0].mxu0
        %v1117 = vadd.f32 0.0, %v1116
        %v1118 = vpop.f32.mrb[0].mxu0
        %1119 = vmatprep.mubr.bf16.mxu0 0
        %1120 = vmatmul.mubr.bf16.gmra.mrb[0].mxu0 %v772
        %v1121 = vpop.f32.mrb[0].mxu0
        %v1122 = vadd.f32 0.0, %v1121
        %v1123 = vpop.f32.mrb[0].mxu0
        %v1124 = vpop.f32.mrb[0].mxu0
        %v1125 = vadd.f32 0.0, %v1124
        %v1126 = vpop.f32.mrb[0].mxu0
        %1127 = vmatprep.mubr.bf16.mxu0 0
        %1128 = vmatmul.mubr.bf16.gmra.mrb[0].mxu0 %v773
        %v1129 = vpop.f32.mrb[0].mxu0
        %v1130 = vadd.f32 0.0, %v1129
        %v1131 = vpop.f32.mrb[0].mxu0
        %v1132 = vpop.f32.mrb[0].mxu0
        %v1133 = vadd.f32 0.0, %v1132
        %v1134 = vpop.f32.mrb[0].mxu0
        %1135 = vmatprep.mubr.bf16.mxu0 0
        %1136 = vmatmul.mubr.bf16.gmra.mrb[0].mxu0 %v774
        %v1137 = vpop.f32.mrb[0].mxu0
        %v1138 = vadd.f32 0.0, %v1137
        %v1139 = vpop.f32.mrb[0].mxu0
        %v1140 = vpop.f32.mrb[0].mxu0
        %v1141 = vadd.f32 0.0, %v1140
        %v1142 = vpop.f32.mrb[0].mxu0
        %1143 = vdwg.mxu0
        %v1144 = vadd.f32 %v535, %v890
        %v1145 = vadd.f32 %v536, %v893
        %v1146 = vadd.f32 %v537, %v898
        %v1147 = vadd.f32 %v538, %v901
        %v1148 = vadd.f32 %v539, %v906
        %v1149 = vadd.f32 %v540, %v909
        %v1150 = vadd.f32 %v541, %v914
        %v1151 = vadd.f32 %v542, %v917
        %v1152 = vadd.f32 %v543, %v922
        %v1153 = vadd.f32 %v544, %v925
        %v1154 = vadd.f32 %v545, %v930
        %v1155 = vadd.f32 %v546, %v933
        %v1156 = vadd.f32 %v547, %v938
        %v1157 = vadd.f32 %v548, %v941
        %v1158 = vadd.f32 %v549, %v946
        %v1159 = vadd.f32 %v550, %v949
        %v1160 = vadd.f32 %v551, %v954
        %v1161 = vadd.f32 %v552, %v957
        %v1162 = vadd.f32 %v553, %v962
        %v1163 = vadd.f32 %v554, %v965
        %v1164 = vadd.f32 %v555, %v970
        %v1165 = vadd.f32 %v556, %v973
        %v1166 = vadd.f32 %v557, %v978
        %v1167 = vadd.f32 %v558, %v981
        %v1168 = vadd.f32 %v559, %v986
        %v1169 = vadd.f32 %v560, %v989
        %v1170 = vadd.f32 %v561, %v994
        %v1171 = vadd.f32 %v562, %v997
        %v1172 = vadd.f32 %v563, %v1002
        %v1173 = vadd.f32 %v564, %v1005
        %v1174 = vadd.f32 %v565, %v1010
        %v1175 = vadd.f32 %v566, %v1013
        %v1176 = vadd.f32 %v567, %v1018
        %v1177 = vadd.f32 %v568, %v1021
        %v1178 = vadd.f32 %v569, %v1026
        %v1179 = vadd.f32 %v570, %v1029
        %v1180 = vadd.f32 %v571, %v1034
        %v1181 = vadd.f32 %v572, %v1037
        %v1182 = vadd.f32 %v573, %v1042
        %v1183 = vadd.f32 %v574, %v1045
        %v1184 = vadd.f32 %v575, %v1050
        %v1185 = vadd.f32 %v576, %v1053
        %v1186 = vadd.f32 %v577, %v1058
        %v1187 = vadd.f32 %v578, %v1061
        %v1188 = vadd.f32 %v579, %v1066
        %v1189 = vadd.f32 %v580, %v1069
        %v1190 = vadd.f32 %v581, %v1074
        %v1191 = vadd.f32 %v582, %v1077
        %v1192 = vadd.f32 %v583, %v1082
        %v1193 = vadd.f32 %v584, %v1085
        %v1194 = vadd.f32 %v585, %v1090
        %v1195 = vadd.f32 %v586, %v1093
        %v1196 = vadd.f32 %v587, %v1098
        %v1197 = vadd.f32 %v588, %v1101
        %v1198 = vadd.f32 %v589, %v1106
        %v1199 = vadd.f32 %v590, %v1109
        %v1200 = vadd.f32 %v591, %v1114
        %v1201 = vadd.f32 %v592, %v1117
        %v1202 = vadd.f32 %v593, %v1122
        %v1203 = vadd.f32 %v594, %v1125
        %v1204 = vadd.f32 %v595, %v1130
        %v1205 = vadd.f32 %v596, %v1133
        %v1206 = vadd.f32 %v597, %v1138
        %v1207 = vadd.f32 %v598, %v1141
        %1208 = vst [vmem:[#allocation2] sm:$0xff] %v1144
        %1209 = vst [vmem:[#allocation2 + $0x8] sm:$0xff] %v1145
        %1210 = vst [vmem:[#allocation2 + $0x10] sm:$0xff] %v1146
        %1211 = vst [vmem:[#allocation2 + $0x18] sm:$0xff] %v1147
        %1212 = vst [vmem:[#allocation2 + $0x20] sm:$0xff] %v1148
        %1213 = vst [vmem:[#allocation2 + $0x28] sm:$0xff] %v1149
        %1214 = vst [vmem:[#allocation2 + $0x30] sm:$0xff] %v1150
        %1215 = vst [vmem:[#allocation2 + $0x38] sm:$0xff] %v1151
        %1216 = vst [vmem:[#allocation2 + $0x40] sm:$0xff] %v1152
        %1217 = vst [vmem:[#allocation2 + $0x48] sm:$0xff] %v1153
        %1218 = vst [vmem:[#allocation2 + $0x50] sm:$0xff] %v1154
        %1219 = vst [vmem:[#allocation2 + $0x58] sm:$0xff] %v1155
        %1220 = vst [vmem:[#allocation2 + $0x60] sm:$0xff] %v1156
        %1221 = vst [vmem:[#allocation2 + $0x68] sm:$0xff] %v1157
        %1222 = vst [vmem:[#allocation2 + $0x70] sm:$0xff] %v1158
        %1223 = vst [vmem:[#allocation2 + $0x78] sm:$0xff] %v1159
        %1224 = vst [vmem:[#allocation2 + $0x80] sm:$0xff] %v1160
        %1225 = vst [vmem:[#allocation2 + $0x88] sm:$0xff] %v1161
        %1226 = vst [vmem:[#allocation2 + $0x90] sm:$0xff] %v1162
        %1227 = vst [vmem:[#allocation2 + $0x98] sm:$0xff] %v1163
        %1228 = vst [vmem:[#allocation2 + $0xa0] sm:$0xff] %v1164
        %1229 = vst [vmem:[#allocation2 + $0xa8] sm:$0xff] %v1165
        %1230 = vst [vmem:[#allocation2 + $0xb0] sm:$0xff] %v1166
        %1231 = vst [vmem:[#allocation2 + $0xb8] sm:$0xff] %v1167
        %1232 = vst [vmem:[#allocation2 + $0xc0] sm:$0xff] %v1168
        %1233 = vst [vmem:[#allocation2 + $0xc8] sm:$0xff] %v1169
        %1234 = vst [vmem:[#allocation2 + $0xd0] sm:$0xff] %v1170
        %1235 = vst [vmem:[#allocation2 + $0xd8] sm:$0xff] %v1171
        %1236 = vst [vmem:[#allocation2 + $0xe0] sm:$0xff] %v1172
        %1237 = vst [vmem:[#allocation2 + $0xe8] sm:$0xff] %v1173
        %1238 = vst [vmem:[#allocation2 + $0xf0] sm:$0xff] %v1174
        %1239 = vst [vmem:[#allocation2 + $0xf8] sm:$0xff] %v1175
        %1240 = vst [vmem:[#allocation2 + $0x100] sm:$0xff] %v1176
        %1241 = vst [vmem:[#allocation2 + $0x108] sm:$0xff] %v1177
        %1242 = vst [vmem:[#allocation2 + $0x110] sm:$0xff] %v1178
        %1243 = vst [vmem:[#allocation2 + $0x118] sm:$0xff] %v1179
        %1244 = vst [vmem:[#allocation2 + $0x120] sm:$0xff] %v1180
        %1245 = vst [vmem:[#allocation2 + $0x128] sm:$0xff] %v1181
        %1246 = vst [vmem:[#allocation2 + $0x130] sm:$0xff] %v1182
        %1247 = vst [vmem:[#allocation2 + $0x138] sm:$0xff] %v1183
        %1248 = vst [vmem:[#allocation2 + $0x140] sm:$0xff] %v1184
        %1249 = vst [vmem:[#allocation2 + $0x148] sm:$0xff] %v1185
        %1250 = vst [vmem:[#allocation2 + $0x150] sm:$0xff] %v1186
        %1251 = vst [vmem:[#allocation2 + $0x158] sm:$0xff] %v1187
        %1252 = vst [vmem:[#allocation2 + $0x160] sm:$0xff] %v1188
        %1253 = vst [vmem:[#allocation2 + $0x168] sm:$0xff] %v1189
        %1254 = vst [vmem:[#allocation2 + $0x170] sm:$0xff] %v1190
        %1255 = vst [vmem:[#allocation2 + $0x178] sm:$0xff] %v1191
        %1256 = vst [vmem:[#allocation2 + $0x180] sm:$0xff] %v1192
        %1257 = vst [vmem:[#allocation2 + $0x188] sm:$0xff] %v1193
        %1258 = vst [vmem:[#allocation2 + $0x190] sm:$0xff] %v1194
        %1259 = vst [vmem:[#allocation2 + $0x198] sm:$0xff] %v1195
        %1260 = vst [vmem:[#allocation2 + $0x1a0] sm:$0xff] %v1196
        %1261 = vst [vmem:[#allocation2 + $0x1a8] sm:$0xff] %v1197
        %1262 = vst [vmem:[#allocation2 + $0x1b0] sm:$0xff] %v1198
        %1263 = vst [vmem:[#allocation2 + $0x1b8] sm:$0xff] %v1199
        %1264 = vst [vmem:[#allocation2 + $0x1c0] sm:$0xff] %v1200
        %1265 = vst [vmem:[#allocation2 + $0x1c8] sm:$0xff] %v1201
        %1266 = vst [vmem:[#allocation2 + $0x1d0] sm:$0xff] %v1202
        %1267 = vst [vmem:[#allocation2 + $0x1d8] sm:$0xff] %v1203
        %1268 = vst [vmem:[#allocation2 + $0x1e0] sm:$0xff] %v1204
        %1269 = vst [vmem:[#allocation2 + $0x1e8] sm:$0xff] %v1205
        %1270 = vst [vmem:[#allocation2 + $0x1f0] sm:$0xff] %v1206
        %1271 = vst [vmem:[#allocation2 + $0x1f8] sm:$0xff] %v1207
        // Predicated region
        $region57: #{tpu_custom_call.1} parent=35 // pred_check
          %p1272 = pneg %p403
        $region58: #{tpu_custom_call.1} parent=35 // pred_check_branch
          %1274 = sbr.rel (%p1272) target = $region60
        $region59: #{tpu_custom_call.1} parent=35 // pred_region
          %v1275 = vld [vmem:[#allocation2] sm:$0xff]
          %v1276 = vld [vmem:[#allocation2 + $0x8] sm:$0xff]
          %v1277 = vld [vmem:[#allocation2 + $0x10] sm:$0xff]
          %v1278 = vld [vmem:[#allocation2 + $0x18] sm:$0xff]
          %v1279 = vld [vmem:[#allocation2 + $0x20] sm:$0xff]
          %v1280 = vld [vmem:[#allocation2 + $0x28] sm:$0xff]
          %v1281 = vld [vmem:[#allocation2 + $0x30] sm:$0xff]
          %v1282 = vld [vmem:[#allocation2 + $0x38] sm:$0xff]
          %v1283 = vld [vmem:[#allocation2 + $0x40] sm:$0xff]
          %v1284 = vld [vmem:[#allocation2 + $0x48] sm:$0xff]
          %v1285 = vld [vmem:[#allocation2 + $0x50] sm:$0xff]
          %v1286 = vld [vmem:[#allocation2 + $0x58] sm:$0xff]
          %v1287 = vld [vmem:[#allocation2 + $0x60] sm:$0xff]
          %v1288 = vld [vmem:[#allocation2 + $0x68] sm:$0xff]
          %v1289 = vld [vmem:[#allocation2 + $0x70] sm:$0xff]
          %v1290 = vld [vmem:[#allocation2 + $0x78] sm:$0xff]
          %v1291 = vld [vmem:[#allocation2 + $0x80] sm:$0xff]
          %v1292 = vld [vmem:[#allocation2 + $0x88] sm:$0xff]
          %v1293 = vld [vmem:[#allocation2 + $0x90] sm:$0xff]
          %v1294 = vld [vmem:[#allocation2 + $0x98] sm:$0xff]
          %v1295 = vld [vmem:[#allocation2 + $0xa0] sm:$0xff]
          %v1296 = vld [vmem:[#allocation2 + $0xa8] sm:$0xff]
          %v1297 = vld [vmem:[#allocation2 + $0xb0] sm:$0xff]
          %v1298 = vld [vmem:[#allocation2 + $0xb8] sm:$0xff]
          %v1299 = vld [vmem:[#allocation2 + $0xc0] sm:$0xff]
          %v1300 = vld [vmem:[#allocation2 + $0xc8] sm:$0xff]
          %v1301 = vld [vmem:[#allocation2 + $0xd0] sm:$0xff]
          %v1302 = vld [vmem:[#allocation2 + $0xd8] sm:$0xff]
          %v1303 = vld [vmem:[#allocation2 + $0xe0] sm:$0xff]
          %v1304 = vld [vmem:[#allocation2 + $0xe8] sm:$0xff]
          %v1305 = vld [vmem:[#allocation2 + $0xf0] sm:$0xff]
          %v1306 = vld [vmem:[#allocation2 + $0xf8] sm:$0xff]
          %v1307 = vld [vmem:[#allocation2 + $0x100] sm:$0xff]
          %v1308 = vld [vmem:[#allocation2 + $0x108] sm:$0xff]
          %v1309 = vld [vmem:[#allocation2 + $0x110] sm:$0xff]
          %v1310 = vld [vmem:[#allocation2 + $0x118] sm:$0xff]
          %v1311 = vld [vmem:[#allocation2 + $0x120] sm:$0xff]
          %v1312 = vld [vmem:[#allocation2 + $0x128] sm:$0xff]
          %v1313 = vld [vmem:[#allocation2 + $0x130] sm:$0xff]
          %v1314 = vld [vmem:[#allocation2 + $0x138] sm:$0xff]
          %v1315 = vld [vmem:[#allocation2 + $0x140] sm:$0xff]
          %v1316 = vld [vmem:[#allocation2 + $0x148] sm:$0xff]
          %v1317 = vld [vmem:[#allocation2 + $0x150] sm:$0xff]
          %v1318 = vld [vmem:[#allocation2 + $0x158] sm:$0xff]
          %v1319 = vld [vmem:[#allocation2 + $0x160] sm:$0xff]
          %v1320 = vld [vmem:[#allocation2 + $0x168] sm:$0xff]
          %v1321 = vld [vmem:[#allocation2 + $0x170] sm:$0xff]
          %v1322 = vld [vmem:[#allocation2 + $0x178] sm:$0xff]
          %v1323 = vld [vmem:[#allocation2 + $0x180] sm:$0xff]
          %v1324 = vld [vmem:[#allocation2 + $0x188] sm:$0xff]
          %v1325 = vld [vmem:[#allocation2 + $0x190] sm:$0xff]
          %v1326 = vld [vmem:[#allocation2 + $0x198] sm:$0xff]
          %v1327 = vld [vmem:[#allocation2 + $0x1a0] sm:$0xff]
          %v1328 = vld [vmem:[#allocation2 + $0x1a8] sm:$0xff]
          %v1329 = vld [vmem:[#allocation2 + $0x1b0] sm:$0xff]
          %v1330 = vld [vmem:[#allocation2 + $0x1b8] sm:$0xff]
          %v1331 = vld [vmem:[#allocation2 + $0x1c0] sm:$0xff]
          %v1332 = vld [vmem:[#allocation2 + $0x1c8] sm:$0xff]
          %v1333 = vld [vmem:[#allocation2 + $0x1d0] sm:$0xff]
          %v1334 = vld [vmem:[#allocation2 + $0x1d8] sm:$0xff]
          %v1335 = vld [vmem:[#allocation2 + $0x1e0] sm:$0xff]
          %v1336 = vld [vmem:[#allocation2 + $0x1e8] sm:$0xff]
          %v1337 = vld [vmem:[#allocation2 + $0x1f0] sm:$0xff]
          %v1338 = vld [vmem:[#allocation2 + $0x1f8] sm:$0xff]
          %v1339 = vpack.c.bf16 %v1276, %v1275
          %v1340 = vpack.c.bf16 %v1278, %v1277
          %v1341 = vpack.c.bf16 %v1280, %v1279
          %v1342 = vpack.c.bf16 %v1282, %v1281
          %v1343 = vpack.c.bf16 %v1284, %v1283
          %v1344 = vpack.c.bf16 %v1286, %v1285
          %v1345 = vpack.c.bf16 %v1288, %v1287
          %v1346 = vpack.c.bf16 %v1290, %v1289
          %v1347 = vpack.c.bf16 %v1292, %v1291
          %v1348 = vpack.c.bf16 %v1294, %v1293
          %v1349 = vpack.c.bf16 %v1296, %v1295
          %v1350 = vpack.c.bf16 %v1298, %v1297
          %v1351 = vpack.c.bf16 %v1300, %v1299
          %v1352 = vpack.c.bf16 %v1302, %v1301
          %v1353 = vpack.c.bf16 %v1304, %v1303
          %v1354 = vpack.c.bf16 %v1306, %v1305
          %v1355 = vpack.c.bf16 %v1308, %v1307
          %v1356 = vpack.c.bf16 %v1310, %v1309
          %v1357 = vpack.c.bf16 %v1312, %v1311
          %v1358 = vpack.c.bf16 %v1314, %v1313
          %v1359 = vpack.c.bf16 %v1316, %v1315
          %v1360 = vpack.c.bf16 %v1318, %v1317
          %v1361 = vpack.c.bf16 %v1320, %v1319
          %v1362 = vpack.c.bf16 %v1322, %v1321
          %v1363 = vpack.c.bf16 %v1324, %v1323
          %v1364 = vpack.c.bf16 %v1326, %v1325
          %v1365 = vpack.c.bf16 %v1328, %v1327
          %v1366 = vpack.c.bf16 %v1330, %v1329
          %v1367 = vpack.c.bf16 %v1332, %v1331
          %v1368 = vpack.c.bf16 %v1334, %v1333
          %v1369 = vpack.c.bf16 %v1336, %v1335
          %v1370 = vpack.c.bf16 %v1338, %v1337
          %v1403 = vunpack.c.l.b16 %v1339
          %v1404 = vunpack.c.h.b16 %v1339
          %v1405 = vunpack.c.l.b16 %v1340
          %v1406 = vunpack.c.h.b16 %v1340
          %v1407 = vunpack.c.l.b16 %v1341
          %v1408 = vunpack.c.h.b16 %v1341
          %v1409 = vunpack.c.l.b16 %v1342
          %v1410 = vunpack.c.h.b16 %v1342
          %v1411 = vunpack.c.l.b16 %v1343
          %v1412 = vunpack.c.h.b16 %v1343
          %v1413 = vunpack.c.l.b16 %v1344
          %v1414 = vunpack.c.h.b16 %v1344
          %v1415 = vunpack.c.l.b16 %v1345
          %v1416 = vunpack.c.h.b16 %v1345
          %v1417 = vunpack.c.l.b16 %v1346
          %v1418 = vunpack.c.h.b16 %v1346
          %v1419 = vunpack.c.l.b16 %v1347
          %v1420 = vunpack.c.h.b16 %v1347
          %v1421 = vunpack.c.l.b16 %v1348
          %v1422 = vunpack.c.h.b16 %v1348
          %v1423 = vunpack.c.l.b16 %v1349
          %v1424 = vunpack.c.h.b16 %v1349
          %v1425 = vunpack.c.l.b16 %v1350
          %v1426 = vunpack.c.h.b16 %v1350
          %v1427 = vunpack.c.l.b16 %v1351
          %v1428 = vunpack.c.h.b16 %v1351
          %v1429 = vunpack.c.l.b16 %v1352
          %v1430 = vunpack.c.h.b16 %v1352
          %v1431 = vunpack.c.l.b16 %v1353
          %v1432 = vunpack.c.h.b16 %v1353
          %v1433 = vunpack.c.l.b16 %v1354
          %v1434 = vunpack.c.h.b16 %v1354
          %v1435 = vunpack.c.l.b16 %v1355
          %v1436 = vunpack.c.h.b16 %v1355
          %v1437 = vunpack.c.l.b16 %v1356
          %v1438 = vunpack.c.h.b16 %v1356
          %v1439 = vunpack.c.l.b16 %v1357
          %v1440 = vunpack.c.h.b16 %v1357
          %v1441 = vunpack.c.l.b16 %v1358
          %v1442 = vunpack.c.h.b16 %v1358
          %v1443 = vunpack.c.l.b16 %v1359
          %v1444 = vunpack.c.h.b16 %v1359
          %v1445 = vunpack.c.l.b16 %v1360
          %v1446 = vunpack.c.h.b16 %v1360
          %v1447 = vunpack.c.l.b16 %v1361
          %v1448 = vunpack.c.h.b16 %v1361
          %v1449 = vunpack.c.l.b16 %v1362
          %v1450 = vunpack.c.h.b16 %v1362
          %v1451 = vunpack.c.l.b16 %v1363
          %v1452 = vunpack.c.h.b16 %v1363
          %v1453 = vunpack.c.l.b16 %v1364
          %v1454 = vunpack.c.h.b16 %v1364
          %v1455 = vunpack.c.l.b16 %v1365
          %v1456 = vunpack.c.h.b16 %v1365
          %v1457 = vunpack.c.l.b16 %v1366
          %v1458 = vunpack.c.h.b16 %v1366
          %v1459 = vunpack.c.l.b16 %v1367
          %v1460 = vunpack.c.h.b16 %v1367
          %v1461 = vunpack.c.l.b16 %v1368
          %v1462 = vunpack.c.h.b16 %v1368
          %v1463 = vunpack.c.l.b16 %v1369
          %v1464 = vunpack.c.h.b16 %v1369
          %v1465 = vunpack.c.l.b16 %v1370
          %v1466 = vunpack.c.h.b16 %v1370
          %v1467 = vpack.c.b16 %v1403, %v1403
          %v1468 = vpack.c.b16 %v1404, %v1404
          %v1469 = vpack.c.b16 %v1405, %v1405
          %v1470 = vpack.c.b16 %v1406, %v1406
          %v1471 = vpack.c.b16 %v1407, %v1407
          %v1472 = vpack.c.b16 %v1408, %v1408
          %v1473 = vpack.c.b16 %v1409, %v1409
          %v1474 = vpack.c.b16 %v1410, %v1410
          %v1475 = vpack.c.b16 %v1411, %v1411
          %v1476 = vpack.c.b16 %v1412, %v1412
          %v1477 = vpack.c.b16 %v1413, %v1413
          %v1478 = vpack.c.b16 %v1414, %v1414
          %v1479 = vpack.c.b16 %v1415, %v1415
          %v1480 = vpack.c.b16 %v1416, %v1416
          %v1481 = vpack.c.b16 %v1417, %v1417
          %v1482 = vpack.c.b16 %v1418, %v1418
          %v1483 = vpack.c.b16 %v1419, %v1419
          %v1484 = vpack.c.b16 %v1420, %v1420
          %v1485 = vpack.c.b16 %v1421, %v1421
          %v1486 = vpack.c.b16 %v1422, %v1422
          %v1487 = vpack.c.b16 %v1423, %v1423
          %v1488 = vpack.c.b16 %v1424, %v1424
          %v1489 = vpack.c.b16 %v1425, %v1425
          %v1490 = vpack.c.b16 %v1426, %v1426
          %v1491 = vpack.c.b16 %v1427, %v1427
          %v1492 = vpack.c.b16 %v1428, %v1428
          %v1493 = vpack.c.b16 %v1429, %v1429
          %v1494 = vpack.c.b16 %v1430, %v1430
          %v1495 = vpack.c.b16 %v1431, %v1431
          %v1496 = vpack.c.b16 %v1432, %v1432
          %v1497 = vpack.c.b16 %v1433, %v1433
          %v1498 = vpack.c.b16 %v1434, %v1434
          %v1499 = vpack.c.b16 %v1435, %v1435
          %v1500 = vpack.c.b16 %v1436, %v1436
          %v1501 = vpack.c.b16 %v1437, %v1437
          %v1502 = vpack.c.b16 %v1438, %v1438
          %v1503 = vpack.c.b16 %v1439, %v1439
          %v1504 = vpack.c.b16 %v1440, %v1440
          %v1505 = vpack.c.b16 %v1441, %v1441
          %v1506 = vpack.c.b16 %v1442, %v1442
          %v1507 = vpack.c.b16 %v1443, %v1443
          %v1508 = vpack.c.b16 %v1444, %v1444
          %v1509 = vpack.c.b16 %v1445, %v1445
          %v1510 = vpack.c.b16 %v1446, %v1446
          %v1511 = vpack.c.b16 %v1447, %v1447
          %v1512 = vpack.c.b16 %v1448, %v1448
          %v1513 = vpack.c.b16 %v1449, %v1449
          %v1514 = vpack.c.b16 %v1450, %v1450
          %v1515 = vpack.c.b16 %v1451, %v1451
          %v1516 = vpack.c.b16 %v1452, %v1452
          %v1517 = vpack.c.b16 %v1453, %v1453
          %v1518 = vpack.c.b16 %v1454, %v1454
          %v1519 = vpack.c.b16 %v1455, %v1455
          %v1520 = vpack.c.b16 %v1456, %v1456
          %v1521 = vpack.c.b16 %v1457, %v1457
          %v1522 = vpack.c.b16 %v1458, %v1458
          %v1523 = vpack.c.b16 %v1459, %v1459
          %v1524 = vpack.c.b16 %v1460, %v1460
          %v1525 = vpack.c.b16 %v1461, %v1461
          %v1526 = vpack.c.b16 %v1462, %v1462
          %v1527 = vpack.c.b16 %v1463, %v1463
          %v1528 = vpack.c.b16 %v1464, %v1464
          %v1529 = vpack.c.b16 %v1465, %v1465
          %v1530 = vpack.c.b16 %v1466, %v1466
          %1595 = vst [vmem:[%s384] sm:$0xf] %v1467
          %1596 = vst [vmem:[%s384 + $0x4] sm:$0xf] %v1468
          %1597 = vst [vmem:[%s384 + $0x8] sm:$0xf] %v1469
          %1598 = vst [vmem:[%s384 + $0xc] sm:$0xf] %v1470
          %1599 = vst [vmem:[%s384 + $0x10] sm:$0xf] %v1471
          %1600 = vst [vmem:[%s384 + $0x14] sm:$0xf] %v1472
          %1601 = vst [vmem:[%s384 + $0x18] sm:$0xf] %v1473
          %1602 = vst [vmem:[%s384 + $0x1c] sm:$0xf] %v1474
          %1603 = vst [vmem:[%s384 + $0x20] sm:$0xf] %v1475
          %1604 = vst [vmem:[%s384 + $0x24] sm:$0xf] %v1476
          %1605 = vst [vmem:[%s384 + $0x28] sm:$0xf] %v1477
          %1606 = vst [vmem:[%s384 + $0x2c] sm:$0xf] %v1478
          %1607 = vst [vmem:[%s384 + $0x30] sm:$0xf] %v1479
          %1608 = vst [vmem:[%s384 + $0x34] sm:$0xf] %v1480
          %1609 = vst [vmem:[%s384 + $0x38] sm:$0xf] %v1481
          %1610 = vst [vmem:[%s384 + $0x3c] sm:$0xf] %v1482
          %1611 = vst [vmem:[%s384 + $0x40] sm:$0xf] %v1483
          %1612 = vst [vmem:[%s384 + $0x44] sm:$0xf] %v1484
          %1613 = vst [vmem:[%s384 + $0x48] sm:$0xf] %v1485
          %1614 = vst [vmem:[%s384 + $0x4c] sm:$0xf] %v1486
          %1615 = vst [vmem:[%s384 + $0x50] sm:$0xf] %v1487
          %1616 = vst [vmem:[%s384 + $0x54] sm:$0xf] %v1488
          %1617 = vst [vmem:[%s384 + $0x58] sm:$0xf] %v1489
          %1618 = vst [vmem:[%s384 + $0x5c] sm:$0xf] %v1490
          %1619 = vst [vmem:[%s384 + $0x60] sm:$0xf] %v1491
          %1620 = vst [vmem:[%s384 + $0x64] sm:$0xf] %v1492
          %1621 = vst [vmem:[%s384 + $0x68] sm:$0xf] %v1493
          %1622 = vst [vmem:[%s384 + $0x6c] sm:$0xf] %v1494
          %1623 = vst [vmem:[%s384 + $0x70] sm:$0xf] %v1495
          %1624 = vst [vmem:[%s384 + $0x74] sm:$0xf] %v1496
          %1625 = vst [vmem:[%s384 + $0x78] sm:$0xf] %v1497
          %1626 = vst [vmem:[%s384 + $0x7c] sm:$0xf] %v1498
          %1627 = vst [vmem:[%s384 + $0x80] sm:$0xf] %v1499
          %1628 = vst [vmem:[%s384 + $0x84] sm:$0xf] %v1500
          %1629 = vst [vmem:[%s384 + $0x88] sm:$0xf] %v1501
          %1630 = vst [vmem:[%s384 + $0x8c] sm:$0xf] %v1502
          %1631 = vst [vmem:[%s384 + $0x90] sm:$0xf] %v1503
          %1632 = vst [vmem:[%s384 + $0x94] sm:$0xf] %v1504
          %1633 = vst [vmem:[%s384 + $0x98] sm:$0xf] %v1505
          %1634 = vst [vmem:[%s384 + $0x9c] sm:$0xf] %v1506
          %1635 = vst [vmem:[%s384 + $0xa0] sm:$0xf] %v1507
          %1636 = vst [vmem:[%s384 + $0xa4] sm:$0xf] %v1508
          %1637 = vst [vmem:[%s384 + $0xa8] sm:$0xf] %v1509
          %1638 = vst [vmem:[%s384 + $0xac] sm:$0xf] %v1510
          %1639 = vst [vmem:[%s384 + $0xb0] sm:$0xf] %v1511
          %1640 = vst [vmem:[%s384 + $0xb4] sm:$0xf] %v1512
          %1641 = vst [vmem:[%s384 + $0xb8] sm:$0xf] %v1513
          %1642 = vst [vmem:[%s384 + $0xbc] sm:$0xf] %v1514
          %1643 = vst [vmem:[%s384 + $0xc0] sm:$0xf] %v1515
          %1644 = vst [vmem:[%s384 + $0xc4] sm:$0xf] %v1516
          %1645 = vst [vmem:[%s384 + $0xc8] sm:$0xf] %v1517
          %1646 = vst [vmem:[%s384 + $0xcc] sm:$0xf] %v1518
          %1647 = vst [vmem:[%s384 + $0xd0] sm:$0xf] %v1519
          %1648 = vst [vmem:[%s384 + $0xd4] sm:$0xf] %v1520
          %1649 = vst [vmem:[%s384 + $0xd8] sm:$0xf] %v1521
          %1650 = vst [vmem:[%s384 + $0xdc] sm:$0xf] %v1522
          %1651 = vst [vmem:[%s384 + $0xe0] sm:$0xf] %v1523
          %1652 = vst [vmem:[%s384 + $0xe4] sm:$0xf] %v1524
          %1653 = vst [vmem:[%s384 + $0xe8] sm:$0xf] %v1525
          %1654 = vst [vmem:[%s384 + $0xec] sm:$0xf] %v1526
          %1655 = vst [vmem:[%s384 + $0xf0] sm:$0xf] %v1527
          %1656 = vst [vmem:[%s384 + $0xf4] sm:$0xf] %v1528
          %1657 = vst [vmem:[%s384 + $0xf8] sm:$0xf] %v1529
          %1658 = vst [vmem:[%s384 + $0xfc] sm:$0xf] %v1530
          %v1659 = vlaneseq
          %v1660 = vshrl.u32 %v1659, 7
          %v1661 = vadd.s32 %v1660, 8
          %v1662 = vadd.s32 %v1660, 16
          %v1663 = vadd.s32 %v1660, 24
          %v1664 = vadd.s32 %v1660, 32
          %v1665 = vadd.s32 %v1660, 40
          %v1666 = vadd.s32 %v1660, 48
          %v1667 = vadd.s32 %v1660, 56
          %v1668 = vadd.s32 %v1660, 64
          %v1669 = vadd.s32 %v1660, 72
          %v1670 = vadd.s32 %v1660, 80
          %v1671 = vadd.s32 %v1660, 88
          %v1672 = vadd.s32 %v1660, 96
          %v1673 = vadd.s32 %v1660, 104
          %v1674 = vadd.s32 %v1660, 112
          %v1675 = vadd.s32 %v1660, 120
          %v1676 = vadd.s32 %v1660, 128
          %v1677 = vadd.s32 %v1660, 136
          %v1678 = vadd.s32 %v1660, 144
          %v1679 = vadd.s32 %v1660, 152
          %v1680 = vadd.s32 %v1660, 160
          %v1681 = vadd.s32 %v1660, 168
          %v1682 = vadd.s32 %v1660, 176
          %v1683 = vadd.s32 %v1660, 184
          %v1684 = vadd.s32 %v1660, 192
          %v1685 = vadd.s32 %v1660, 200
          %v1686 = vadd.s32 %v1660, 208
          %v1687 = vadd.s32 %v1660, 216
          %v1688 = vadd.s32 %v1660, 224
          %v1689 = vadd.s32 %v1660, 232
          %v1690 = vadd.s32 %v1660, 240
          %v1691 = vadd.s32 %v1660, 248
          %v1692 = vadd.s32 %v1660, 256
          %v1693 = vadd.s32 %v1660, 264
          %v1694 = vadd.s32 %v1660, 272
          %v1695 = vadd.s32 %v1660, 280
          %v1696 = vadd.s32 %v1660, 288
          %v1697 = vadd.s32 %v1660, 296
          %v1698 = vadd.s32 %v1660, 304
          %v1699 = vadd.s32 %v1660, 312
          %v1700 = vadd.s32 %v1660, 320
          %v1701 = vadd.s32 %v1660, 328
          %v1702 = vadd.s32 %v1660, 336
          %v1703 = vadd.s32 %v1660, 344
          %v1704 = vadd.s32 %v1660, 352
          %v1705 = vadd.s32 %v1660, 360
          %v1706 = vadd.s32 %v1660, 368
          %v1707 = vadd.s32 %v1660, 376
          %v1708 = vadd.s32 %v1660, 384
          %v1709 = vadd.s32 %v1660, 392
          %v1710 = vadd.s32 %v1660, 400
          %v1711 = vadd.s32 %v1660, 408
          %v1712 = vadd.s32 %v1660, 416
          %v1713 = vadd.s32 %v1660, 424
          %v1714 = vadd.s32 %v1660, 432
          %v1715 = vadd.s32 %v1660, 440
          %v1716 = vadd.s32 %v1660, 448
          %v1717 = vadd.s32 %v1660, 456
          %v1718 = vadd.s32 %v1660, 464
          %v1719 = vadd.s32 %v1660, 472
          %v1720 = vadd.s32 %v1660, 480
          %v1721 = vadd.s32 %v1660, 488
          %v1722 = vadd.s32 %v1660, 496
          %v1723 = vadd.s32 %v1660, 504
          %s1724 = smul.u32 %s36, 512
          %v1725 = vstv %s1724
          %v1726 = vadd.s32 %v1660, %v1725
          %v1727 = vadd.s32 %v1661, %v1725
          %v1728 = vadd.s32 %v1662, %v1725
          %v1729 = vadd.s32 %v1663, %v1725
          %v1730 = vadd.s32 %v1664, %v1725
          %v1731 = vadd.s32 %v1665, %v1725
          %v1732 = vadd.s32 %v1666, %v1725
          %v1733 = vadd.s32 %v1667, %v1725
          %v1734 = vadd.s32 %v1668, %v1725
          %v1735 = vadd.s32 %v1669, %v1725
          %v1736 = vadd.s32 %v1670, %v1725
          %v1737 = vadd.s32 %v1671, %v1725
          %v1738 = vadd.s32 %v1672, %v1725
          %v1739 = vadd.s32 %v1673, %v1725
          %v1740 = vadd.s32 %v1674, %v1725
          %v1741 = vadd.s32 %v1675, %v1725
          %v1742 = vadd.s32 %v1676, %v1725
          %v1743 = vadd.s32 %v1677, %v1725
          %v1744 = vadd.s32 %v1678, %v1725
          %v1745 = vadd.s32 %v1679, %v1725
          %v1746 = vadd.s32 %v1680, %v1725
          %v1747 = vadd.s32 %v1681, %v1725
          %v1748 = vadd.s32 %v1682, %v1725
          %v1749 = vadd.s32 %v1683, %v1725
          %v1750 = vadd.s32 %v1684, %v1725
          %v1751 = vadd.s32 %v1685, %v1725
          %v1752 = vadd.s32 %v1686, %v1725
          %v1753 = vadd.s32 %v1687, %v1725
          %v1754 = vadd.s32 %v1688, %v1725
          %v1755 = vadd.s32 %v1689, %v1725
          %v1756 = vadd.s32 %v1690, %v1725
          %v1757 = vadd.s32 %v1691, %v1725
          %v1758 = vadd.s32 %v1692, %v1725
          %v1759 = vadd.s32 %v1693, %v1725
          %v1760 = vadd.s32 %v1694, %v1725
          %v1761 = vadd.s32 %v1695, %v1725
          %v1762 = vadd.s32 %v1696, %v1725
          %v1763 = vadd.s32 %v1697, %v1725
          %v1764 = vadd.s32 %v1698, %v1725
          %v1765 = vadd.s32 %v1699, %v1725
          %v1766 = vadd.s32 %v1700, %v1725
          %v1767 = vadd.s32 %v1701, %v1725
          %v1768 = vadd.s32 %v1702, %v1725
          %v1769 = vadd.s32 %v1703, %v1725
          %v1770 = vadd.s32 %v1704, %v1725
          %v1771 = vadd.s32 %v1705, %v1725
          %v1772 = vadd.s32 %v1706, %v1725
          %v1773 = vadd.s32 %v1707, %v1725
          %v1774 = vadd.s32 %v1708, %v1725
          %v1775 = vadd.s32 %v1709, %v1725
          %v1776 = vadd.s32 %v1710, %v1725
          %v1777 = vadd.s32 %v1711, %v1725
          %v1778 = vadd.s32 %v1712, %v1725
          %v1779 = vadd.s32 %v1713, %v1725
          %v1780 = vadd.s32 %v1714, %v1725
          %v1781 = vadd.s32 %v1715, %v1725
          %v1782 = vadd.s32 %v1716, %v1725
          %v1783 = vadd.s32 %v1717, %v1725
          %v1784 = vadd.s32 %v1718, %v1725
          %v1785 = vadd.s32 %v1719, %v1725
          %v1786 = vadd.s32 %v1720, %v1725
          %v1787 = vadd.s32 %v1721, %v1725
          %v1788 = vadd.s32 %v1722, %v1725
          %v1789 = vadd.s32 %v1723, %v1725
          %vm1790 = vcmp.lt.s32.totalorder %v1726, 2048
          %vm1791 = vcmp.lt.s32.totalorder %v1727, 2048
          %vm1792 = vcmp.lt.s32.totalorder %v1728, 2048
          %vm1793 = vcmp.lt.s32.totalorder %v1729, 2048
          %vm1794 = vcmp.lt.s32.totalorder %v1730, 2048
          %vm1795 = vcmp.lt.s32.totalorder %v1731, 2048
          %vm1796 = vcmp.lt.s32.totalorder %v1732, 2048
          %vm1797 = vcmp.lt.s32.totalorder %v1733, 2048
          %vm1798 = vcmp.lt.s32.totalorder %v1734, 2048
          %vm1799 = vcmp.lt.s32.totalorder %v1735, 2048
          %vm1800 = vcmp.lt.s32.totalorder %v1736, 2048
          %vm1801 = vcmp.lt.s32.totalorder %v1737, 2048
          %vm1802 = vcmp.lt.s32.totalorder %v1738, 2048
          %vm1803 = vcmp.lt.s32.totalorder %v1739, 2048
          %vm1804 = vcmp.lt.s32.totalorder %v1740, 2048
          %vm1805 = vcmp.lt.s32.totalorder %v1741, 2048
          %vm1806 = vcmp.lt.s32.totalorder %v1742, 2048
          %vm1807 = vcmp.lt.s32.totalorder %v1743, 2048
          %vm1808 = vcmp.lt.s32.totalorder %v1744, 2048
          %vm1809 = vcmp.lt.s32.totalorder %v1745, 2048
          %vm1810 = vcmp.lt.s32.totalorder %v1746, 2048
          %vm1811 = vcmp.lt.s32.totalorder %v1747, 2048
          %vm1812 = vcmp.lt.s32.totalorder %v1748, 2048
          %vm1813 = vcmp.lt.s32.totalorder %v1749, 2048
          %vm1814 = vcmp.lt.s32.totalorder %v1750, 2048
          %vm1815 = vcmp.lt.s32.totalorder %v1751, 2048
          %vm1816 = vcmp.lt.s32.totalorder %v1752, 2048
          %vm1817 = vcmp.lt.s32.totalorder %v1753, 2048
          %vm1818 = vcmp.lt.s32.totalorder %v1754, 2048
          %vm1819 = vcmp.lt.s32.totalorder %v1755, 2048
          %vm1820 = vcmp.lt.s32.totalorder %v1756, 2048
          %vm1821 = vcmp.lt.s32.totalorder %v1757, 2048
          %vm1822 = vcmp.lt.s32.totalorder %v1758, 2048
          %vm1823 = vcmp.lt.s32.totalorder %v1759, 2048
          %vm1824 = vcmp.lt.s32.totalorder %v1760, 2048
          %vm1825 = vcmp.lt.s32.totalorder %v1761, 2048
          %vm1826 = vcmp.lt.s32.totalorder %v1762, 2048
          %vm1827 = vcmp.lt.s32.totalorder %v1763, 2048
          %vm1828 = vcmp.lt.s32.totalorder %v1764, 2048
          %vm1829 = vcmp.lt.s32.totalorder %v1765, 2048
          %vm1830 = vcmp.lt.s32.totalorder %v1766, 2048
          %vm1831 = vcmp.lt.s32.totalorder %v1767, 2048
          %vm1832 = vcmp.lt.s32.totalorder %v1768, 2048
          %vm1833 = vcmp.lt.s32.totalorder %v1769, 2048
          %vm1834 = vcmp.lt.s32.totalorder %v1770, 2048
          %vm1835 = vcmp.lt.s32.totalorder %v1771, 2048
          %vm1836 = vcmp.lt.s32.totalorder %v1772, 2048
          %vm1837 = vcmp.lt.s32.totalorder %v1773, 2048
          %vm1838 = vcmp.lt.s32.totalorder %v1774, 2048
          %vm1839 = vcmp.lt.s32.totalorder %v1775, 2048
          %vm1840 = vcmp.lt.s32.totalorder %v1776, 2048
          %vm1841 = vcmp.lt.s32.totalorder %v1777, 2048
          %vm1842 = vcmp.lt.s32.totalorder %v1778, 2048
          %vm1843 = vcmp.lt.s32.totalorder %v1779, 2048
          %vm1844 = vcmp.lt.s32.totalorder %v1780, 2048
          %vm1845 = vcmp.lt.s32.totalorder %v1781, 2048
          %vm1846 = vcmp.lt.s32.totalorder %v1782, 2048
          %vm1847 = vcmp.lt.s32.totalorder %v1783, 2048
          %vm1848 = vcmp.lt.s32.totalorder %v1784, 2048
          %vm1849 = vcmp.lt.s32.totalorder %v1785, 2048
          %vm1850 = vcmp.lt.s32.totalorder %v1786, 2048
          %vm1851 = vcmp.lt.s32.totalorder %v1787, 2048
          %vm1852 = vcmp.lt.s32.totalorder %v1788, 2048
          %vm1853 = vcmp.lt.s32.totalorder %v1789, 2048
          %v1854 = vsel %vm1790, 1, 0
          %v1855 = vsel %vm1791, 1, 0
          %v1856 = vsel %vm1792, 1, 0
          %v1857 = vsel %vm1793, 1, 0
          %v1858 = vsel %vm1794, 1, 0
          %v1859 = vsel %vm1795, 1, 0
          %v1860 = vsel %vm1796, 1, 0
          %v1861 = vsel %vm1797, 1, 0
          %v1862 = vsel %vm1798, 1, 0
          %v1863 = vsel %vm1799, 1, 0
          %v1864 = vsel %vm1800, 1, 0
          %v1865 = vsel %vm1801, 1, 0
          %v1866 = vsel %vm1802, 1, 0
          %v1867 = vsel %vm1803, 1, 0
          %v1868 = vsel %vm1804, 1, 0
          %v1869 = vsel %vm1805, 1, 0
          %v1870 = vsel %vm1806, 1, 0
          %v1871 = vsel %vm1807, 1, 0
          %v1872 = vsel %vm1808, 1, 0
          %v1873 = vsel %vm1809, 1, 0
          %v1874 = vsel %vm1810, 1, 0
          %v1875 = vsel %vm1811, 1, 0
          %v1876 = vsel %vm1812, 1, 0
          %v1877 = vsel %vm1813, 1, 0
          %v1878 = vsel %vm1814, 1, 0
          %v1879 = vsel %vm1815, 1, 0
          %v1880 = vsel %vm1816, 1, 0
          %v1881 = vsel %vm1817, 1, 0
          %v1882 = vsel %vm1818, 1, 0
          %v1883 = vsel %vm1819, 1, 0
          %v1884 = vsel %vm1820, 1, 0
          %v1885 = vsel %vm1821, 1, 0
          %v1886 = vsel %vm1822, 1, 0
          %v1887 = vsel %vm1823, 1, 0
          %v1888 = vsel %vm1824, 1, 0
          %v1889 = vsel %vm1825, 1, 0
          %v1890 = vsel %vm1826, 1, 0
          %v1891 = vsel %vm1827, 1, 0
          %v1892 = vsel %vm1828, 1, 0
          %v1893 = vsel %vm1829, 1, 0
          %v1894 = vsel %vm1830, 1, 0
          %v1895 = vsel %vm1831, 1, 0
          %v1896 = vsel %vm1832, 1, 0
          %v1897 = vsel %vm1833, 1, 0
          %v1898 = vsel %vm1834, 1, 0
          %v1899 = vsel %vm1835, 1, 0
          %v1900 = vsel %vm1836, 1, 0
          %v1901 = vsel %vm1837, 1, 0
          %v1902 = vsel %vm1838, 1, 0
          %v1903 = vsel %vm1839, 1, 0
          %v1904 = vsel %vm1840, 1, 0
          %v1905 = vsel %vm1841, 1, 0
          %v1906 = vsel %vm1842, 1, 0
          %v1907 = vsel %vm1843, 1, 0
          %v1908 = vsel %vm1844, 1, 0
          %v1909 = vsel %vm1845, 1, 0
          %v1910 = vsel %vm1846, 1, 0
          %v1911 = vsel %vm1847, 1, 0
          %v1912 = vsel %vm1848, 1, 0
          %v1913 = vsel %vm1849, 1, 0
          %v1914 = vsel %vm1850, 1, 0
          %v1915 = vsel %vm1851, 1, 0
          %v1916 = vsel %vm1852, 1, 0
          %v1917 = vsel %vm1853, 1, 0
          %vm1918 = vcmp.eq.s32.totalorder %v1854, 1
          %vm1919 = vcmp.eq.s32.totalorder %v1855, 1
          %vm1920 = vcmp.eq.s32.totalorder %v1856, 1
          %vm1921 = vcmp.eq.s32.totalorder %v1857, 1
          %vm1922 = vcmp.eq.s32.totalorder %v1858, 1
          %vm1923 = vcmp.eq.s32.totalorder %v1859, 1
          %vm1924 = vcmp.eq.s32.totalorder %v1860, 1
          %vm1925 = vcmp.eq.s32.totalorder %v1861, 1
          %vm1926 = vcmp.eq.s32.totalorder %v1862, 1
          %vm1927 = vcmp.eq.s32.totalorder %v1863, 1
          %vm1928 = vcmp.eq.s32.totalorder %v1864, 1
          %vm1929 = vcmp.eq.s32.totalorder %v1865, 1
          %vm1930 = vcmp.eq.s32.totalorder %v1866, 1
          %vm1931 = vcmp.eq.s32.totalorder %v1867, 1
          %vm1932 = vcmp.eq.s32.totalorder %v1868, 1
          %vm1933 = vcmp.eq.s32.totalorder %v1869, 1
          %vm1934 = vcmp.eq.s32.totalorder %v1870, 1
          %vm1935 = vcmp.eq.s32.totalorder %v1871, 1
          %vm1936 = vcmp.eq.s32.totalorder %v1872, 1
          %vm1937 = vcmp.eq.s32.totalorder %v1873, 1
          %vm1938 = vcmp.eq.s32.totalorder %v1874, 1
          %vm1939 = vcmp.eq.s32.totalorder %v1875, 1
          %vm1940 = vcmp.eq.s32.totalorder %v1876, 1
          %vm1941 = vcmp.eq.s32.totalorder %v1877, 1
          %vm1942 = vcmp.eq.s32.totalorder %v1878, 1
          %vm1943 = vcmp.eq.s32.totalorder %v1879, 1
          %vm1944 = vcmp.eq.s32.totalorder %v1880, 1
          %vm1945 = vcmp.eq.s32.totalorder %v1881, 1
          %vm1946 = vcmp.eq.s32.totalorder %v1882, 1
          %vm1947 = vcmp.eq.s32.totalorder %v1883, 1
          %vm1948 = vcmp.eq.s32.totalorder %v1884, 1
          %vm1949 = vcmp.eq.s32.totalorder %v1885, 1
          %vm1950 = vcmp.eq.s32.totalorder %v1886, 1
          %vm1951 = vcmp.eq.s32.totalorder %v1887, 1
          %vm1952 = vcmp.eq.s32.totalorder %v1888, 1
          %vm1953 = vcmp.eq.s32.totalorder %v1889, 1
          %vm1954 = vcmp.eq.s32.totalorder %v1890, 1
          %vm1955 = vcmp.eq.s32.totalorder %v1891, 1
          %vm1956 = vcmp.eq.s32.totalorder %v1892, 1
          %vm1957 = vcmp.eq.s32.totalorder %v1893, 1
          %vm1958 = vcmp.eq.s32.totalorder %v1894, 1
          %vm1959 = vcmp.eq.s32.totalorder %v1895, 1
          %vm1960 = vcmp.eq.s32.totalorder %v1896, 1
          %vm1961 = vcmp.eq.s32.totalorder %v1897, 1
          %vm1962 = vcmp.eq.s32.totalorder %v1898, 1
          %vm1963 = vcmp.eq.s32.totalorder %v1899, 1
          %vm1964 = vcmp.eq.s32.totalorder %v1900, 1
          %vm1965 = vcmp.eq.s32.totalorder %v1901, 1
          %vm1966 = vcmp.eq.s32.totalorder %v1902, 1
          %vm1967 = vcmp.eq.s32.totalorder %v1903, 1
          %vm1968 = vcmp.eq.s32.totalorder %v1904, 1
          %vm1969 = vcmp.eq.s32.totalorder %v1905, 1
          %vm1970 = vcmp.eq.s32.totalorder %v1906, 1
          %vm1971 = vcmp.eq.s32.totalorder %v1907, 1
          %vm1972 = vcmp.eq.s32.totalorder %v1908, 1
          %vm1973 = vcmp.eq.s32.totalorder %v1909, 1
          %vm1974 = vcmp.eq.s32.totalorder %v1910, 1
          %vm1975 = vcmp.eq.s32.totalorder %v1911, 1
          %vm1976 = vcmp.eq.s32.totalorder %v1912, 1
          %vm1977 = vcmp.eq.s32.totalorder %v1913, 1
          %vm1978 = vcmp.eq.s32.totalorder %v1914, 1
          %vm1979 = vcmp.eq.s32.totalorder %v1915, 1
          %vm1980 = vcmp.eq.s32.totalorder %v1916, 1
          %vm1981 = vcmp.eq.s32.totalorder %v1917, 1
          %v1982 = vsel %vm1918, %v1275, 0.0
          %v1983 = vsel %vm1919, %v1276, 0.0
          %v1984 = vsel %vm1920, %v1277, 0.0
          %v1985 = vsel %vm1921, %v1278, 0.0
          %v1986 = vsel %vm1922, %v1279, 0.0
          %v1987 = vsel %vm1923, %v1280, 0.0
          %v1988 = vsel %vm1924, %v1281, 0.0
          %v1989 = vsel %vm1925, %v1282, 0.0
          %v1990 = vsel %vm1926, %v1283, 0.0
          %v1991 = vsel %vm1927, %v1284, 0.0
          %v1992 = vsel %vm1928, %v1285, 0.0
          %v1993 = vsel %vm1929, %v1286, 0.0
          %v1994 = vsel %vm1930, %v1287, 0.0
          %v1995 = vsel %vm1931, %v1288, 0.0
          %v1996 = vsel %vm1932, %v1289, 0.0
          %v1997 = vsel %vm1933, %v1290, 0.0
          %v1998 = vsel %vm1934, %v1291, 0.0
          %v1999 = vsel %vm1935, %v1292, 0.0
          %v2000 = vsel %vm1936, %v1293, 0.0
          %v2001 = vsel %vm1937, %v1294, 0.0
          %v2002 = vsel %vm1938, %v1295, 0.0
          %v2003 = vsel %vm1939, %v1296, 0.0
          %v2004 = vsel %vm1940, %v1297, 0.0
          %v2005 = vsel %vm1941, %v1298, 0.0
          %v2006 = vsel %vm1942, %v1299, 0.0
          %v2007 = vsel %vm1943, %v1300, 0.0
          %v2008 = vsel %vm1944, %v1301, 0.0
          %v2009 = vsel %vm1945, %v1302, 0.0
          %v2010 = vsel %vm1946, %v1303, 0.0
          %v2011 = vsel %vm1947, %v1304, 0.0
          %v2012 = vsel %vm1948, %v1305, 0.0
          %v2013 = vsel %vm1949, %v1306, 0.0
          %v2014 = vsel %vm1950, %v1307, 0.0
          %v2015 = vsel %vm1951, %v1308, 0.0
          %v2016 = vsel %vm1952, %v1309, 0.0
          %v2017 = vsel %vm1953, %v1310, 0.0
          %v2018 = vsel %vm1954, %v1311, 0.0
          %v2019 = vsel %vm1955, %v1312, 0.0
          %v2020 = vsel %vm1956, %v1313, 0.0
          %v2021 = vsel %vm1957, %v1314, 0.0
          %v2022 = vsel %vm1958, %v1315, 0.0
          %v2023 = vsel %vm1959, %v1316, 0.0
          %v2024 = vsel %vm1960, %v1317, 0.0
          %v2025 = vsel %vm1961, %v1318, 0.0
          %v2026 = vsel %vm1962, %v1319, 0.0
          %v2027 = vsel %vm1963, %v1320, 0.0
          %v2028 = vsel %vm1964, %v1321, 0.0
          %v2029 = vsel %vm1965, %v1322, 0.0
          %v2030 = vsel %vm1966, %v1323, 0.0
          %v2031 = vsel %vm1967, %v1324, 0.0
          %v2032 = vsel %vm1968, %v1325, 0.0
          %v2033 = vsel %vm1969, %v1326, 0.0
          %v2034 = vsel %vm1970, %v1327, 0.0
          %v2035 = vsel %vm1971, %v1328, 0.0
          %v2036 = vsel %vm1972, %v1329, 0.0
          %v2037 = vsel %vm1973, %v1330, 0.0
          %v2038 = vsel %vm1974, %v1331, 0.0
          %v2039 = vsel %vm1975, %v1332, 0.0
          %v2040 = vsel %vm1976, %v1333, 0.0
          %v2041 = vsel %vm1977, %v1334, 0.0
          %v2042 = vsel %vm1978, %v1335, 0.0
          %v2043 = vsel %vm1979, %v1336, 0.0
          %v2044 = vsel %vm1980, %v1337, 0.0
          %v2045 = vsel %vm1981, %v1338, 0.0
          %v2046 = vadd.f32 %v1982, %v1983
          %v2047 = vadd.f32 %v2046, %v1984
          %v2048 = vadd.f32 %v2047, %v1985
          %v2049 = vadd.f32 %v2048, %v1986
          %v2050 = vadd.f32 %v2049, %v1987
          %v2051 = vadd.f32 %v2050, %v1988
          %v2052 = vadd.f32 %v2051, %v1989
          %v2053 = vadd.f32 %v2052, %v1990
          %v2054 = vadd.f32 %v2053, %v1991
          %v2055 = vadd.f32 %v2054, %v1992
          %v2056 = vadd.f32 %v2055, %v1993
          %v2057 = vadd.f32 %v2056, %v1994
          %v2058 = vadd.f32 %v2057, %v1995
          %v2059 = vadd.f32 %v2058, %v1996
          %v2060 = vadd.f32 %v2059, %v1997
          %v2061 = vadd.f32 %v2060, %v1998
          %v2062 = vadd.f32 %v2061, %v1999
          %v2063 = vadd.f32 %v2062, %v2000
          %v2064 = vadd.f32 %v2063, %v2001
          %v2065 = vadd.f32 %v2064, %v2002
          %v2066 = vadd.f32 %v2065, %v2003
          %v2067 = vadd.f32 %v2066, %v2004
          %v2068 = vadd.f32 %v2067, %v2005
          %v2069 = vadd.f32 %v2068, %v2006
          %v2070 = vadd.f32 %v2069, %v2007
          %v2071 = vadd.f32 %v2070, %v2008
          %v2072 = vadd.f32 %v2071, %v2009
          %v2073 = vadd.f32 %v2072, %v2010
          %v2074 = vadd.f32 %v2073, %v2011
          %v2075 = vadd.f32 %v2074, %v2012
          %v2076 = vadd.f32 %v2075, %v2013
          %v2077 = vadd.f32 %v2076, %v2014
          %v2078 = vadd.f32 %v2077, %v2015
          %v2079 = vadd.f32 %v2078, %v2016
          %v2080 = vadd.f32 %v2079, %v2017
          %v2081 = vadd.f32 %v2080, %v2018
          %v2082 = vadd.f32 %v2081, %v2019
          %v2083 = vadd.f32 %v2082, %v2020
          %v2084 = vadd.f32 %v2083, %v2021
          %v2085 = vadd.f32 %v2084, %v2022
          %v2086 = vadd.f32 %v2085, %v2023
          %v2087 = vadd.f32 %v2086, %v2024
          %v2088 = vadd.f32 %v2087, %v2025
          %v2089 = vadd.f32 %v2088, %v2026
          %v2090 = vadd.f32 %v2089, %v2027
          %v2091 = vadd.f32 %v2090, %v2028
          %v2092 = vadd.f32 %v2091, %v2029
          %v2093 = vadd.f32 %v2092, %v2030
          %v2094 = vadd.f32 %v2093, %v2031
          %v2095 = vadd.f32 %v2094, %v2032
          %v2096 = vadd.f32 %v2095, %v2033
          %v2097 = vadd.f32 %v2096, %v2034
          %v2098 = vadd.f32 %v2097, %v2035
          %v2099 = vadd.f32 %v2098, %v2036
          %v2100 = vadd.f32 %v2099, %v2037
          %v2101 = vadd.f32 %v2100, %v2038
          %v2102 = vadd.f32 %v2101, %v2039
          %v2103 = vadd.f32 %v2102, %v2040
          %v2104 = vadd.f32 %v2103, %v2041
          %v2105 = vadd.f32 %v2104, %v2042
          %v2106 = vadd.f32 %v2105, %v2043
          %v2107 = vadd.f32 %v2106, %v2044
          %v2108 = vadd.f32 %v2107, %v2045
          %v2109 = vrot.slane %v2108, 4
          %v2110 = vadd.f32 %v2108, %v2109
          %v2111 = vrot.slane %v2110, 2
          %v2112 = vadd.f32 %v2110, %v2111
          %v2113 = vrot.slane %v2112, 1
          %v2114 = vadd.f32 %v2112, %v2113
          %v2115 = vmul.f32 %v1982, %v1982
          %v2116 = vmul.f32 %v1983, %v1983
          %v2117 = vmul.f32 %v1984, %v1984
          %v2118 = vmul.f32 %v1985, %v1985
          %v2119 = vmul.f32 %v1986, %v1986
          %v2120 = vmul.f32 %v1987, %v1987
          %v2121 = vmul.f32 %v1988, %v1988
          %v2122 = vmul.f32 %v1989, %v1989
          %v2123 = vmul.f32 %v1990, %v1990
          %v2124 = vmul.f32 %v1991, %v1991
          %v2125 = vmul.f32 %v1992, %v1992
          %v2126 = vmul.f32 %v1993, %v1993
          %v2127 = vmul.f32 %v1994, %v1994
          %v2128 = vmul.f32 %v1995, %v1995
          %v2129 = vmul.f32 %v1996, %v1996
          %v2130 = vmul.f32 %v1997, %v1997
          %v2131 = vmul.f32 %v1998, %v1998
          %v2132 = vmul.f32 %v1999, %v1999
          %v2133 = vmul.f32 %v2000, %v2000
          %v2134 = vmul.f32 %v2001, %v2001
          %v2135 = vmul.f32 %v2002, %v2002
          %v2136 = vmul.f32 %v2003, %v2003
          %v2137 = vmul.f32 %v2004, %v2004
          %v2138 = vmul.f32 %v2005, %v2005
          %v2139 = vmul.f32 %v2006, %v2006
          %v2140 = vmul.f32 %v2007, %v2007
          %v2141 = vmul.f32 %v2008, %v2008
          %v2142 = vmul.f32 %v2009, %v2009
          %v2143 = vmul.f32 %v2010, %v2010
          %v2144 = vmul.f32 %v2011, %v2011
          %v2145 = vmul.f32 %v2012, %v2012
          %v2146 = vmul.f32 %v2013, %v2013
          %v2147 = vmul.f32 %v2014, %v2014
          %v2148 = vmul.f32 %v2015, %v2015
          %v2149 = vmul.f32 %v2016, %v2016
          %v2150 = vmul.f32 %v2017, %v2017
          %v2151 = vmul.f32 %v2018, %v2018
          %v2152 = vmul.f32 %v2019, %v2019
          %v2153 = vmul.f32 %v2020, %v2020
          %v2154 = vmul.f32 %v2021, %v2021
          %v2155 = vmul.f32 %v2022, %v2022
          %v2156 = vmul.f32 %v2023, %v2023
          %v2157 = vmul.f32 %v2024, %v2024
          %v2158 = vmul.f32 %v2025, %v2025
          %v2159 = vmul.f32 %v2026, %v2026
          %v2160 = vmul.f32 %v2027, %v2027
          %v2161 = vmul.f32 %v2028, %v2028
          %v2162 = vmul.f32 %v2029, %v2029
          %v2163 = vmul.f32 %v2030, %v2030
          %v2164 = vmul.f32 %v2031, %v2031
          %v2165 = vmul.f32 %v2032, %v2032
          %v2166 = vmul.f32 %v2033, %v2033
          %v2167 = vmul.f32 %v2034, %v2034
          %v2168 = vmul.f32 %v2035, %v2035
          %v2169 = vmul.f32 %v2036, %v2036
          %v2170 = vmul.f32 %v2037, %v2037
          %v2171 = vmul.f32 %v2038, %v2038
          %v2172 = vmul.f32 %v2039, %v2039
          %v2173 = vmul.f32 %v2040, %v2040
          %v2174 = vmul.f32 %v2041, %v2041
          %v2175 = vmul.f32 %v2042, %v2042
          %v2176 = vmul.f32 %v2043, %v2043
          %v2177 = vmul.f32 %v2044, %v2044
          %v2178 = vmul.f32 %v2045, %v2045
          %v2179 = vadd.f32 %v2115, %v2116
          %v2180 = vadd.f32 %v2179, %v2117
          %v2181 = vadd.f32 %v2180, %v2118
          %v2182 = vadd.f32 %v2181, %v2119
          %v2183 = vadd.f32 %v2182, %v2120
          %v2184 = vadd.f32 %v2183, %v2121
          %v2185 = vadd.f32 %v2184, %v2122
          %v2186 = vadd.f32 %v2185, %v2123
          %v2187 = vadd.f32 %v2186, %v2124
          %v2188 = vadd.f32 %v2187, %v2125
          %v2189 = vadd.f32 %v2188, %v2126
          %v2190 = vadd.f32 %v2189, %v2127
          %v2191 = vadd.f32 %v2190, %v2128
          %v2192 = vadd.f32 %v2191, %v2129
          %v2193 = vadd.f32 %v2192, %v2130
          %v2194 = vadd.f32 %v2193, %v2131
          %v2195 = vadd.f32 %v2194, %v2132
          %v2196 = vadd.f32 %v2195, %v2133
          %v2197 = vadd.f32 %v2196, %v2134
          %v2198 = vadd.f32 %v2197, %v2135
          %v2199 = vadd.f32 %v2198, %v2136
          %v2200 = vadd.f32 %v2199, %v2137
          %v2201 = vadd.f32 %v2200, %v2138
          %v2202 = vadd.f32 %v2201, %v2139
          %v2203 = vadd.f32 %v2202, %v2140
          %v2204 = vadd.f32 %v2203, %v2141
          %v2205 = vadd.f32 %v2204, %v2142
          %v2206 = vadd.f32 %v2205, %v2143
          %v2207 = vadd.f32 %v2206, %v2144
          %v2208 = vadd.f32 %v2207, %v2145
          %v2209 = vadd.f32 %v2208, %v2146
          %v2210 = vadd.f32 %v2209, %v2147
          %v2211 = vadd.f32 %v2210, %v2148
          %v2212 = vadd.f32 %v2211, %v2149
          %v2213 = vadd.f32 %v2212, %v2150
          %v2214 = vadd.f32 %v2213, %v2151
          %v2215 = vadd.f32 %v2214, %v2152
          %v2216 = vadd.f32 %v2215, %v2153
          %v2217 = vadd.f32 %v2216, %v2154
          %v2218 = vadd.f32 %v2217, %v2155
          %v2219 = vadd.f32 %v2218, %v2156
          %v2220 = vadd.f32 %v2219, %v2157
          %v2221 = vadd.f32 %v2220, %v2158
          %v2222 = vadd.f32 %v2221, %v2159
          %v2223 = vadd.f32 %v2222, %v2160
          %v2224 = vadd.f32 %v2223, %v2161
          %v2225 = vadd.f32 %v2224, %v2162
          %v2226 = vadd.f32 %v2225, %v2163
          %v2227 = vadd.f32 %v2226, %v2164
          %v2228 = vadd.f32 %v2227, %v2165
          %v2229 = vadd.f32 %v2228, %v2166
          %v2230 = vadd.f32 %v2229, %v2167
          %v2231 = vadd.f32 %v2230, %v2168
          %v2232 = vadd.f32 %v2231, %v2169
          %v2233 = vadd.f32 %v2232, %v2170
          %v2234 = vadd.f32 %v2233, %v2171
          %v2235 = vadd.f32 %v2234, %v2172
          %v2236 = vadd.f32 %v2235, %v2173
          %v2237 = vadd.f32 %v2236, %v2174
          %v2238 = vadd.f32 %v2237, %v2175
          %v2239 = vadd.f32 %v2238, %v2176
          %v2240 = vadd.f32 %v2239, %v2177
          %v2241 = vadd.f32 %v2240, %v2178
          %v2242 = vrot.slane %v2241, 4
          %v2243 = vadd.f32 %v2241, %v2242
          %v2244 = vrot.slane %v2243, 2
          %v2245 = vadd.f32 %v2243, %v2244
          %v2246 = vrot.slane %v2245, 1
          %v2247 = vadd.f32 %v2245, %v2246
          %2248 = vst [vmem:[%s391] sm:$0xff] %v2114
          %2249 = vst [vmem:[%s398] sm:$0xff] %v2247
        $region60: #{tpu_custom_call.1} parent=35 // pred_fallthru
          _
        %s2250 = sand.u32 %s168, 1
        %s2251 = scalar_lea.sflag [#allocation5], %s2250
        %s2252 = sand.u32 %s168, 1
        %s2253 = smul.addr %s2252, 256
        %s2254 = scalar_lea.vmem [#allocation11], %s2253
        %s2255 = sand.u32 %s31, 1
        %s2256 = scalar_lea.sflag [#allocation13], %s2255
        %s2257 = sand.u32 %s196, 1
        %s2258 = smul.addr %s2257, 8
        %s2259 = scalar_lea.vmem [#allocation12], %s2258
        %s2260 = sand.u32 %s31, 1
        %s2261 = scalar_lea.sflag [#allocation13], %s2260
        %s2262 = sand.u32 %s224, 1
        %s2263 = smul.addr %s2262, 8
        %s2264 = scalar_lea.vmem [#allocation14], %s2263
        // Predicated region
        $region61: #{tpu_custom_call.1} parent=35 // pred_check
          %p2265 = pneg %p178
        $region62: #{tpu_custom_call.1} parent=35 // pred_check_branch
          %2267 = sbr.rel (%p2265) target = $region64
        $region63: #{tpu_custom_call.1} parent=35 // pred_region
          %s2268 = smul.u32 64, %s36
          %s2270 = ssub.s32 4096, 4096
          %2271 = vsyncadd %s2251, %s2270
          %s2272 = smul.addr %s2268, 3
          %s2273 = sadd.s32 %s37, %s2272
          %s2274 = smul.addr %s2273, 64
          %s2275 = scalar_lea.hbm %s4, %s2274
          %s2276 = sshll.u32 %s2254, 4
          %s2277 = int_to_ptr.vmem [resolvable:$true] %s2276
          %2282 = dma.vmem_to_hbm [thread:$0]  %s2277, 4096, %s2275, %s2251, 64, 192, 4
        $region64: #{tpu_custom_call.1} parent=35 // pred_fallthru
          _
        // Predicated region
        $region65: #{tpu_custom_call.1} parent=35 // pred_check
          %p2283 = pneg %p206
        $region66: #{tpu_custom_call.1} parent=35 // pred_check_branch
          %2285 = sbr.rel (%p2283) target = $region68
        $region67: #{tpu_custom_call.1} parent=35 // pred_region
          %s2287 = ssub.s32 128, 128
          %2288 = vsyncadd %s2256, %s2287
          %s2289 = smul.addr %s36, 3
          %s2290 = sadd.s32 %s37, %s2289
          %s2291 = smul.addr %s2290, 128
          %s2292 = scalar_lea.hbm %s5, %s2291
          %s2294 = sshll.u32 %s2259, 4
          %s2295 = int_to_ptr.vmem [resolvable:$true] %s2294
          %2297 = dma.vmem_to_hbm [thread:$0]  %s2295, 128, %s2292, %s2256
        $region68: #{tpu_custom_call.1} parent=35 // pred_fallthru
          _
        // Predicated region
        $region69: #{tpu_custom_call.1} parent=35 // pred_check
          %p2298 = pneg %p234
        $region70: #{tpu_custom_call.1} parent=35 // pred_check_branch
          %2300 = sbr.rel (%p2298) target = $region72
        $region71: #{tpu_custom_call.1} parent=35 // pred_region
          %s2302 = ssub.s32 128, 128
          %2303 = vsyncadd %s2261, %s2302
          %s2304 = smul.addr %s36, 3
          %s2305 = sadd.s32 %s37, %s2304
          %s2306 = smul.addr %s2305, 128
          %s2307 = scalar_lea.hbm %s6, %s2306
          %s2309 = sshll.u32 %s2264, 4
          %s2310 = int_to_ptr.vmem [resolvable:$true] %s2309
          %2312 = dma.vmem_to_hbm [thread:$0]  %s2310, 128, %s2307, %s2261
        $region72: #{tpu_custom_call.1} parent=35 // pred_fallthru
          _
      $region36: #{tpu_custom_call.1} parent=5 // pred_fallthru
        _
      %p2313 = scmp.le.s32.totalorder 2, %s26
      // Predicated region
      $region73: #{tpu_custom_call.1} parent=5 // pred_check
        %p2314 = pneg %p2313
      $region74: #{tpu_custom_call.1} parent=5 // pred_check_branch
        %2316 = sbr.rel (%p2314) target = $region76
      $region75: #{tpu_custom_call.1} parent=5 // pred_region
        %s2317 = ssub.s32 %s26, 2
        // Predicated region
        $region77: #{tpu_custom_call.1} parent=75 // pred_check
          %p2318 = pneg %p184
        $region78: #{tpu_custom_call.1} parent=75 // pred_check_branch
          %2320 = sbr.rel (%p2318) target = $region80
        $region79: #{tpu_custom_call.1} parent=75 // pred_region
          %s2321 = sand.u32 %s169, 1
          %s2322 = scalar_lea.sflag [#allocation5], %s2321
          %s2323 = sand.u32 %s169, 1
          %s2324 = smul.addr %s2323, 256
          %s2325 = scalar_lea.vmem [#allocation11], %s2324
          %2326 = dma.done %s2322, 4096
        $region80: #{tpu_custom_call.1} parent=75 // pred_fallthru
          _
        // Predicated region
        $region81: #{tpu_custom_call.1} parent=75 // pred_check
          %p2327 = pneg %p212
        $region82: #{tpu_custom_call.1} parent=75 // pred_check_branch
          %2329 = sbr.rel (%p2327) target = $region84
        $region83: #{tpu_custom_call.1} parent=75 // pred_region
          %s2330 = sand.u32 %s32, 1
          %s2331 = scalar_lea.sflag [#allocation13], %s2330
          %s2332 = sand.u32 %s197, 1
          %s2333 = smul.addr %s2332, 8
          %s2334 = scalar_lea.vmem [#allocation12], %s2333
          %2335 = dma.done %s2331, 128
        $region84: #{tpu_custom_call.1} parent=75 // pred_fallthru
          _
        // Predicated region
        $region85: #{tpu_custom_call.1} parent=75 // pred_check
          %p2336 = pneg %p240
        $region86: #{tpu_custom_call.1} parent=75 // pred_check_branch
          %2338 = sbr.rel (%p2336) target = $region88
        $region87: #{tpu_custom_call.1} parent=75 // pred_region
          %s2339 = sand.u32 %s32, 1
          %s2340 = scalar_lea.sflag [#allocation13], %s2339
          %s2341 = sand.u32 %s225, 1
          %s2342 = smul.addr %s2341, 8
          %s2343 = scalar_lea.vmem [#allocation14], %s2342
          %2344 = dma.done %s2340, 128
        $region88: #{tpu_custom_call.1} parent=75 // pred_fallthru
          _
      $region76: #{tpu_custom_call.1} parent=5 // pred_fallthru
        _
    $region6: #{tpu_custom_call.1} parent=1 // loop_footer
      %s30 = sadd.s32 1, %s26
    $region7: #{tpu_custom_call.1} parent=1 // loop_footer_branch
      %25 = sbr.rel target = $region3
    $region8: #{tpu_custom_call.1} parent=1 // loop_exit
      _
    %2345 = vsyncpa [#allocation4], 1
    %s2346 = scalar_lea.sflag [#allocation4], 1
    %2347 = vsyncpa %s2346, 1
    %2348 = vsyncpa [#allocation7], 1
    %s2349 = scalar_lea.sflag [#allocation7], 1
    %2350 = vsyncpa %s2349, 1
    %2351 = vsyncpa [#allocation10], 1
    %2352 = vsyncpa [#allocation5], 1
    %s2353 = scalar_lea.sflag [#allocation5], 1
    %2354 = vsyncpa %s2353, 1
    %2355 = vsyncpa [#allocation13], 1
    %s2356 = scalar_lea.sflag [#allocation13], 1
    %2357 = vsyncpa %s2356, 1

</llo_original>
